<compile_context>
chip_gen: v7x
topology: tpu7x:2x2x1
jax: 0.10.0
libtpu: 0.0.40
codegen_flags: <defaults>
</compile_context>

<pallas_src>
import functools

import jax
import jax.numpy as jnp
import numpy as np
from jax.experimental import pallas as pl
from jax.experimental.pallas import tpu as pltpu


# ------------------------- fused bidirectional LSTM layer kernel -------------------------

def _bilstm_layer_kernel(*refs, T, B, H, fuse_fc):
    """One bidirectional LSTM layer (optionally with fused flatten+FC epilogue).

    Inputs (all full-array VMEM refs):
      x_ref   : (T*B, D)   f32   row t*B + b == x[t, b]
      wih_ref : (D, 8H)    bf16  [W_ih_f^T | W_ih_b^T]
      b_ref   : (1, 8H)    f32   [b_ih_f + b_hh_f | b_ih_b + b_hh_b]
      whh_ref : (H, 8H)    f32   [W_hh_f^T | W_hh_b^T]
      (fuse_fc only) fcw_ref: (T*2H, O) f32 = fc_w^T, fcb_ref: (1, O) f32
    Output:
      fuse_fc=False: out_ref (T*B, 2H) f32   (row t*B+b, cols [0:H]=fwd h_t, [H:2H]=bwd h_t)
      fuse_fc=True : out_ref (B, O)    f32   (FC result)
    """
    if fuse_fc:
        (x_ref, wih_ref, b_ref, whh_ref, fcw_ref, fcb_ref,
         out_ref, xg_scr, h_scr, c_scr, ho_scr) = refs
        store_ref = ho_scr
    else:
        (x_ref, wih_ref, b_ref, whh_ref,
         out_ref, xg_scr, h_scr, c_scr) = refs
        store_ref = out_ref

    H4 = 4 * H

    # ---- hoisted input projection: all timesteps, both directions, one bf16 MXU matmul ----
    xg_scr[...] = (
        jnp.dot(x_ref[...].astype(jnp.bfloat16), wih_ref[...],
                preferred_element_type=jnp.float32)
        + b_ref[...]
    )

    h_scr[...] = jnp.zeros_like(h_scr)   # rows 0:B = fwd state, B:2B = bwd state
    c_scr[...] = jnp.zeros_like(c_scr)
    whh = whh_ref[...]                   # (H, 8H), loaded once (loop is unrolled)

    # ---- fused fwd/bwd recurrence, fully unrolled over T (static indices -> static slices) ----
    for s in range(T):
        sf = s            # fwd processes time sf
        sb = T - 1 - s    # bwd processes time sb
        rec = jnp.dot(h_scr[...], whh, preferred_element_type=jnp.float32)   # (2B, 8H)
        gx_f = xg_scr[sf * B:(sf + 1) * B, 0:H4]                             # (B, 4H)
        gx_b = xg_scr[sb * B:(sb + 1) * B, H4:2 * H4]                        # (B, 4H)
        gates = jnp.concatenate(
            [rec[0:B, 0:H4] + gx_f, rec[B:2 * B, H4:2 * H4] + gx_b], axis=0)  # (2B, 4H)
        # PyTorch gate order: i, f, g, o
        i = jax.nn.sigmoid(gates[:, 0:H])
        f = jax.nn.sigmoid(gates[:, H:2 * H])
        g = jnp.tanh(gates[:, 2 * H:3 * H])
        o = jax.nn.sigmoid(gates[:, 3 * H:4 * H])
        c = f * c_scr[...] + i * g
        hn = o * jnp.tanh(c)
        c_scr[...] = c
        h_scr[...] = hn
        # fwd h_t -> row block sf, lanes [0:H]; bwd h_{sb} -> row block sb, lanes [H:2H]
        store_ref[sf * B:(sf + 1) * B, 0:H] = hn[0:B, :].astype(store_ref.dtype)
        store_ref[sb * B:(sb + 1) * B, H:2 * H] = hn[B:2 * B, :].astype(store_ref.dtype)

    if fuse_fc:
        # ---- FC epilogue (off the serial path): y[b] = sum_t h[t,b,:] @ fc_w^T[t*2H:(t+1)*2H] ----
        O = out_ref.shape[-1]
        acc = jnp.zeros((B, O), jnp.float32)
        for t in range(T):
            acc = acc + jnp.dot(ho_scr[t * B:(t + 1) * B, :],
                                fcw_ref[t * 2 * H:(t + 1) * 2 * H, :],
                                preferred_element_type=jnp.float32)
        out_ref[...] = acc + fcb_ref[...]


def _bilstm_layer(x2d, wih, bias, whh, *, T, B, H, fc_w=None, fc_b=None):
    """Run one fused bidirectional layer. x2d: (T*B, D).  Returns (T*B, 2H) or (B, O)."""
    fuse_fc = fc_w is not None
    kernel = functools.partial(_bilstm_layer_kernel, T=T, B=B, H=H, fuse_fc=fuse_fc)
    scratch = [
        pltpu.VMEM((T * B, 8 * H), jnp.float32),  # hoisted input-projection gates
        pltpu.VMEM((2 * B, H), jnp.float32),      # h state (fwd rows 0:B, bwd rows B:2B)
        pltpu.VMEM((2 * B, H), jnp.float32),      # c state
    ]
    if fuse_fc:
        O = fc_w.shape[1]
        scratch.append(pltpu.VMEM((T * B, 2 * H), jnp.float32))  # per-step hidden outputs
        return pl.pallas_call(
            kernel,
            out_shape=jax.ShapeDtypeStruct((B, O), jnp.float32),
            scratch_shapes=scratch,
        )(x2d, wih, bias, whh, fc_w, fc_b)
    return pl.pallas_call(
        kernel,
        out_shape=jax.ShapeDtypeStruct((T * B, 2 * H), jnp.float32),
        scratch_shapes=scratch,
    )(x2d, wih, bias, whh)


# ------------------------------------ full forward ------------------------------------

def my_lstm_forward(x, params, *, T, hidden_size, num_layers):
    H = hidden_size
    _, B, D0 = x.shape
    h2d = x.reshape(T * B, D0)  # (T*B, D), row t*B + b == x[t, b]
    for layer in range(num_layers):
        p = params["lstm"][layer]
        # Pre-transpose / pre-stack weights wrapper-side (one-time, off the serial path).
        wih = jnp.concatenate([p["w_ih_f"].T, p["w_ih_b"].T], axis=1).astype(jnp.bfloat16)
        whh = jnp.concatenate([p["w_hh_f"].T, p["w_hh_b"].T], axis=1).astype(jnp.float32)
        bias = jnp.concatenate(
            [p["b_ih_f"] + p["b_hh_f"], p["b_ih_b"] + p["b_hh_b"]]
        ).reshape(1, 8 * H).astype(jnp.float32)
        if layer == num_layers - 1:
            fcw = params["fc_w"].T.astype(jnp.float32)            # (T*2H, O)
            fcb = params["fc_b"].reshape(1, -1).astype(jnp.float32)
            h2d = _bilstm_layer(h2d, wih, bias, whh, T=T, B=B, H=H, fc_w=fcw, fc_b=fcb)
        else:
            h2d = _bilstm_layer(h2d, wih, bias, whh, T=T, B=B, H=H)
    return h2d  # (B, 5)


# -------------------------------------- reference --------------------------------------

def _ref_lstm_dir(x, w_ih, w_hh, b_ih, b_hh, reverse):
    T, B, _ = x.shape
    H = w_hh.shape[1]

    def step(carry, x_t):
        h, c = carry
        gates = x_t @ w_ih.T + h @ w_hh.T + b_ih + b_hh
        i = jax.nn.sigmoid(gates[:, :H])
        f = jax.nn.sigmoid(gates[:, H:2 * H])
        g = jnp.tanh(gates[:, 2 * H:3 * H])
        o = jax.nn.sigmoid(gates[:, 3 * H:])
        c = f * c + i * g
        h = o * jnp.tanh(c)
        return (h, c), h

    xs = x[::-1] if reverse else x
    init = (jnp.zeros((B, H), jnp.float32), jnp.zeros((B, H), jnp.float32))
    _, ys = jax.lax.scan(step, init, xs)
    return ys[::-1] if reverse else ys


def _ref_forward(x, params, *, T, hidden_size, num_layers):
    h = x
    for layer in range(num_layers):
        p = params["lstm"][layer]
        fwd = _ref_lstm_dir(h, p["w_ih_f"], p["w_hh_f"], p["b_ih_f"], p["b_hh_f"], False)
        bwd = _ref_lstm_dir(h, p["w_ih_b"], p["w_hh_b"], p["b_ih_b"], p["b_hh_b"], True)
        h = jnp.concatenate([fwd, bwd], axis=-1)
    B = h.shape[1]
    x_flat = jnp.transpose(h, (1, 0, 2)).reshape(B, T * 2 * hidden_size)
    return x_flat @ params["fc_w"].T + params["fc_b"]


# --------------------------------------- params ----------------------------------------

def init_params(key, *, T, input_size, hidden_size, num_layers):
    H = hidden_size
    stdv = 1.0 / np.sqrt(H)  # PyTorch nn.LSTM default init: U(-1/sqrt(H), 1/sqrt(H))
    params = {"lstm": []}
    for layer in range(num_layers):
        d_in = input_size if layer == 0 else 2 * H
        lp = {}
        for suffix, din in (("f", d_in), ("b", d_in)):
            key, k1, k2, k3, k4 = jax.random.split(key, 5)
            lp[f"w_ih_{suffix}"] = jax.random.uniform(k1, (4 * H, din), jnp.float32, -stdv, stdv)
            lp[f"w_hh_{suffix}"] = jax.random.uniform(k2, (4 * H, H), jnp.float32, -stdv, stdv)
            lp[f"b_ih_{suffix}"] = jax.random.uniform(k3, (4 * H,), jnp.float32, -stdv, stdv)
            lp[f"b_hh_{suffix}"] = jax.random.uniform(k4, (4 * H,), jnp.float32, -stdv, stdv)
        params["lstm"].append(lp)
    # FC: kaiming_normal_(nonlinearity='sigmoid') -> gain=1, std=1/sqrt(fan_in); bias = 0
    fan_in = T * 2 * H
    key, kw = jax.random.split(key)
    params["fc_w"] = jax.random.normal(kw, (5, fan_in), jnp.float32) / np.sqrt(fan_in)
    params["fc_b"] = jnp.zeros((5,), jnp.float32)
    return params


# ---------------------------------------- main -----------------------------------------

if __name__ == "__main__":
    T, B, INPUT, HIDDEN, LAYERS = 8, 2, 16, 32, 2

    key = jax.random.PRNGKey(0)
    key, kx = jax.random.split(key)
    x = jax.random.normal(kx, (T, B, INPUT), jnp.float32)  # (T, B, input_size)

    params = init_params(key, T=T, input_size=INPUT, hidden_size=HIDDEN, num_layers=LAYERS)

    out = my_lstm_forward(x, params, T=T, hidden_size=HIDDEN, num_layers=LAYERS)
    out = jax.block_until_ready(out)
    assert out.shape == (B, 5), out.shape

    ref = _ref_forward(x, params, T=T, hidden_size=HIDDEN, num_layers=LAYERS)
    np.testing.assert_allclose(np.asarray(out), np.asarray(ref), rtol=5e-2, atol=5e-2)

    print("KERNEL_OK")
</pallas_src>

<mosaic_0001>
module attributes {stable_mosaic.version = 11 : i64} {
  func.func @_bilstm_layer_kernel(%arg0: memref<16x16xf32, #tpu.memory_space<vmem>>, %arg1: memref<16x256xbf16, #tpu.memory_space<vmem>>, %arg2: memref<1x256xf32, #tpu.memory_space<vmem>>, %arg3: memref<32x256xf32, #tpu.memory_space<vmem>>, %arg4: memref<16x64xf32, #tpu.memory_space<vmem>>, %arg5: memref<16x256xf32, #tpu.memory_space<vmem>>, %arg6: memref<4x32xf32, #tpu.memory_space<vmem>>, %arg7: memref<4x32xf32, #tpu.memory_space<vmem>>) attributes {dimension_semantics = [], scalar_prefetch = 0 : i64, scratch_operands = 3 : i64, tpu.core_type = #tpu.core_type<tc>} {
    %c0 = arith.constant 0 : index
    %c0_0 = arith.constant 0 : index
    %0 = vector.load %arg0[%c0, %c0_0] : memref<16x16xf32, #tpu.memory_space<vmem>>, vector<16x16xf32>
    %1 = arith.truncf %0 : vector<16x16xf32> to vector<16x16xbf16>
    %c0_1 = arith.constant 0 : index
    %c0_2 = arith.constant 0 : index
    %2 = vector.load %arg1[%c0_1, %c0_2] : memref<16x256xbf16, #tpu.memory_space<vmem>>, vector<16x256xbf16>
    %cst = arith.constant dense<0.000000e+00> : vector<16x256xf32>
    %3 = tpu.matmul %1, %2, %cst {dimension_numbers = #tpu.dot_dimension_numbers<[1], [0], [0], [1], [0, 0, 1, 1], [], []>} : vector<16x16xbf16>, vector<16x256xbf16>, vector<16x256xf32> -> vector<16x256xf32>
    %c0_3 = arith.constant 0 : index
    %c0_4 = arith.constant 0 : index
    %4 = vector.load %arg2[%c0_3, %c0_4] : memref<1x256xf32, #tpu.memory_space<vmem>>, vector<1x256xf32>
    %5 = vector.broadcast %4 : vector<1x256xf32> to vector<16x256xf32>
    %6 = arith.addf %3, %5 : vector<16x256xf32>
    %c0_5 = arith.constant 0 : index
    %c0_6 = arith.constant 0 : index
    %7 = vector.load %arg5[%c0_5, %c0_6] : memref<16x256xf32, #tpu.memory_space<vmem>>, vector<16x256xf32>
    tpu.vector_store %arg5[%c0_5, %c0_6], %6 {strides = array<i32>} : memref<16x256xf32, #tpu.memory_space<vmem>>, vector<16x256xf32>,
    %cst_7 = arith.constant 0.000000e+00 : f32
    %8 = vector.broadcast %cst_7 : f32 to vector<4x32xf32>
    %c0_8 = arith.constant 0 : index
    %c0_9 = arith.constant 0 : index
    %9 = vector.load %arg6[%c0_8, %c0_9] : memref<4x32xf32, #tpu.memory_space<vmem>>, vector<4x32xf32>
    tpu.vector_store %arg6[%c0_8, %c0_9], %8 {strides = array<i32>} : memref<4x32xf32, #tpu.memory_space<vmem>>, vector<4x32xf32>,
    %cst_10 = arith.constant 0.000000e+00 : f32
    %10 = vector.broadcast %cst_10 : f32 to vector<4x32xf32>
    %c0_11 = arith.constant 0 : index
    %c0_12 = arith.constant 0 : index
    %11 = vector.load %arg7[%c0_11, %c0_12] : memref<4x32xf32, #tpu.memory_space<vmem>>, vector<4x32xf32>
    tpu.vector_store %arg7[%c0_11, %c0_12], %10 {strides = array<i32>} : memref<4x32xf32, #tpu.memory_space<vmem>>, vector<4x32xf32>,
    %c0_13 = arith.constant 0 : index
    %c0_14 = arith.constant 0 : index
    %12 = vector.load %arg3[%c0_13, %c0_14] : memref<32x256xf32, #tpu.memory_space<vmem>>, vector<32x256xf32>
    %c0_15 = arith.constant 0 : index
    %c0_16 = arith.constant 0 : index
    %13 = vector.load %arg6[%c0_15, %c0_16] : memref<4x32xf32, #tpu.memory_space<vmem>>, vector<4x32xf32>
    %cst_17 = arith.constant dense<0.000000e+00> : vector<4x256xf32>
    %14 = tpu.matmul %13, %12, %cst_17 {dimension_numbers = #tpu.dot_dimension_numbers<[1], [0], [0], [1], [0, 0, 1, 1], [], []>} : vector<4x32xf32>, vector<32x256xf32>, vector<4x256xf32> -> vector<4x256xf32>
    %c0_18 = arith.constant 0 : index
    %c0_19 = arith.constant 0 : index
    %15 = vector.load %arg5[%c0_18, %c0_19] : memref<16x256xf32, #tpu.memory_space<vmem>>, vector<2x128xf32>
    %c14 = arith.constant 14 : index
    %c128 = arith.constant 128 : index
    %16 = vector.load %arg5[%c14, %c128] : memref<16x256xf32, #tpu.memory_space<vmem>>, vector<2x128xf32>
    %17 = vector.extract_strided_slice %14 {offsets = [0, 0], sizes = [2, 128], strides = [1, 1]} : vector<4x256xf32> to vector<2x128xf32>
    %18 = arith.addf %17, %15 : vector<2x128xf32>
    %19 = vector.extract_strided_slice %14 {offsets = [2, 128], sizes = [2, 128], strides = [1, 1]} : vector<4x256xf32> to vector<2x128xf32>
    %20 = arith.addf %19, %16 : vector<2x128xf32>
    %21 = tpu.concatenate %18, %20 in 0 : vector<2x128xf32>, vector<2x128xf32> -> vector<4x128xf32>
    %22 = vector.extract_strided_slice %21 {offsets = [0, 0], sizes = [4, 32], strides = [1, 1]} : vector<4x128xf32> to vector<4x32xf32>
    %23 = arith.negf %22 : vector<4x32xf32>
    %24 = math.exp %23 : vector<4x32xf32>
    %cst_20 = arith.constant 1.000000e+00 : f32
    %25 = vector.broadcast %cst_20 : f32 to vector<4x32xf32>
    %26 = arith.addf %25, %24 : vector<4x32xf32>
    %27 = arith.divf %25, %26 : vector<4x32xf32>
    %28 = vector.extract_strided_slice %21 {offsets = [0, 32], sizes = [4, 32], strides = [1, 1]} : vector<4x128xf32> to vector<4x32xf32>
    %29 = arith.negf %28 : vector<4x32xf32>
    %30 = math.exp %29 : vector<4x32xf32>
    %cst_21 = arith.constant 1.000000e+00 : f32
    %31 = vector.broadcast %cst_21 : f32 to vector<4x32xf32>
    %32 = arith.addf %31, %30 : vector<4x32xf32>
    %33 = arith.divf %31, %32 : vector<4x32xf32>
    %34 = vector.extract_strided_slice %21 {offsets = [0, 64], sizes = [4, 32], strides = [1, 1]} : vector<4x128xf32> to vector<4x32xf32>
    %35 = math.tanh %34 : vector<4x32xf32>
    %36 = vector.extract_strided_slice %21 {offsets = [0, 96], sizes = [4, 32], strides = [1, 1]} : vector<4x128xf32> to vector<4x32xf32>
    %37 = arith.negf %36 : vector<4x32xf32>
    %38 = math.exp %37 : vector<4x32xf32>
    %cst_22 = arith.constant 1.000000e+00 : f32
    %39 = vector.broadcast %cst_22 : f32 to vector<4x32xf32>
    %40 = arith.addf %39, %38 : vector<4x32xf32>
    %41 = arith.divf %39, %40 : vector<4x32xf32>
    %c0_23 = arith.constant 0 : index
    %c0_24 = arith.constant 0 : index
    %42 = vector.load %arg7[%c0_23, %c0_24] : memref<4x32xf32, #tpu.memory_space<vmem>>, vector<4x32xf32>
    %43 = arith.mulf %33, %42 : vector<4x32xf32>
    %44 = arith.mulf %27, %35 : vector<4x32xf32>
    %45 = arith.addf %43, %44 : vector<4x32xf32>
    %46 = math.tanh %45 : vector<4x32xf32>
    %47 = arith.mulf %41, %46 : vector<4x32xf32>
    %c0_25 = arith.constant 0 : index
    %c0_26 = arith.constant 0 : index
    %48 = vector.load %arg7[%c0_25, %c0_26] : memref<4x32xf32, #tpu.memory_space<vmem>>, vector<4x32xf32>
    tpu.vector_store %arg7[%c0_25, %c0_26], %45 {strides = array<i32>} : memref<4x32xf32, #tpu.memory_space<vmem>>, vector<4x32xf32>,
    %c0_27 = arith.constant 0 : index
    %c0_28 = arith.constant 0 : index
    %49 = vector.load %arg6[%c0_27, %c0_28] : memref<4x32xf32, #tpu.memory_space<vmem>>, vector<4x32xf32>
    tpu.vector_store %arg6[%c0_27, %c0_28], %47 {strides = array<i32>} : memref<4x32xf32, #tpu.memory_space<vmem>>, vector<4x32xf32>,
    %50 = vector.extract_strided_slice %47 {offsets = [0, 0], sizes = [2, 32], strides = [1, 1]} : vector<4x32xf32> to vector<2x32xf32>
    %c0_29 = arith.constant 0 : index
    %c0_30 = arith.constant 0 : index
    %51 = vector.load %arg4[%c0_29, %c0_30] : memref<16x64xf32, #tpu.memory_space<vmem>>, vector<2x32xf32>
    tpu.vector_store %arg4[%c0_29, %c0_30], %50 {strides = array<i32>} : memref<16x64xf32, #tpu.memory_space<vmem>>, vector<2x32xf32>,
    %52 = vector.extract_strided_slice %47 {offsets = [2, 0], sizes = [2, 32], strides = [1, 1]} : vector<4x32xf32> to vector<2x32xf32>
    %c14_31 = arith.constant 14 : index
    %c32 = arith.constant 32 : index
    %53 = vector.load %arg4[%c14_31, %c32] : memref<16x64xf32, #tpu.memory_space<vmem>>, vector<2x32xf32>
    tpu.vector_store %arg4[%c14_31, %c32], %52 {strides = array<i32>} : memref<16x64xf32, #tpu.memory_space<vmem>>, vector<2x32xf32>,
    %c0_32 = arith.constant 0 : index
    %c0_33 = arith.constant 0 : index
    %54 = vector.load %arg6[%c0_32, %c0_33] : memref<4x32xf32, #tpu.memory_space<vmem>>, vector<4x32xf32>
    %cst_34 = arith.constant dense<0.000000e+00> : vector<4x256xf32>
    %55 = tpu.matmul %54, %12, %cst_34 {dimension_numbers = #tpu.dot_dimension_numbers<[1], [0], [0], [1], [0, 0, 1, 1], [], []>} : vector<4x32xf32>, vector<32x256xf32>, vector<4x256xf32> -> vector<4x256xf32>
    %c2 = arith.constant 2 : index
    %c0_35 = arith.constant 0 : index
    %56 = vector.load %arg5[%c2, %c0_35] : memref<16x256xf32, #tpu.memory_space<vmem>>, vector<2x128xf32>
    %c12 = arith.constant 12 : index
    %c128_36 = arith.constant 128 : index
    %57 = vector.load %arg5[%c12, %c128_36] : memref<16x256xf32, #tpu.memory_space<vmem>>, vector<2x128xf32>
    %58 = vector.extract_strided_slice %55 {offsets = [0, 0], sizes = [2, 128], strides = [1, 1]} : vector<4x256xf32> to vector<2x128xf32>
    %59 = arith.addf %58, %56 : vector<2x128xf32>
    %60 = vector.extract_strided_slice %55 {offsets = [2, 128], sizes = [2, 128], strides = [1, 1]} : vector<4x256xf32> to vector<2x128xf32>
    %61 = arith.addf %60, %57 : vector<2x128xf32>
    %62 = tpu.concatenate %59, %61 in 0 : vector<2x128xf32>, vector<2x128xf32> -> vector<4x128xf32>
    %63 = vector.extract_strided_slice %62 {offsets = [0, 0], sizes = [4, 32], strides = [1, 1]} : vector<4x128xf32> to vector<4x32xf32>
    %64 = arith.negf %63 : vector<4x32xf32>
    %65 = math.exp %64 : vector<4x32xf32>
    %cst_37 = arith.constant 1.000000e+00 : f32
    %66 = vector.broadcast %cst_37 : f32 to vector<4x32xf32>
    %67 = arith.addf %66, %65 : vector<4x32xf32>
    %68 = arith.divf %66, %67 : vector<4x32xf32>
    %69 = vector.extract_strided_slice %62 {offsets = [0, 32], sizes = [4, 32], strides = [1, 1]} : vector<4x128xf32> to vector<4x32xf32>
    %70 = arith.negf %69 : vector<4x32xf32>
    %71 = math.exp %70 : vector<4x32xf32>
    %cst_38 = arith.constant 1.000000e+00 : f32
    %72 = vector.broadcast %cst_38 : f32 to vector<4x32xf32>
    %73 = arith.addf %72, %71 : vector<4x32xf32>
    %74 = arith.divf %72, %73 : vector<4x32xf32>
    %75 = vector.extract_strided_slice %62 {offsets = [0, 64], sizes = [4, 32], strides = [1, 1]} : vector<4x128xf32> to vector<4x32xf32>
    %76 = math.tanh %75 : vector<4x32xf32>
    %77 = vector.extract_strided_slice %62 {offsets = [0, 96], sizes = [4, 32], strides = [1, 1]} : vector<4x128xf32> to vector<4x32xf32>
    %78 = arith.negf %77 : vector<4x32xf32>
    %79 = math.exp %78 : vector<4x32xf32>
    %cst_39 = arith.constant 1.000000e+00 : f32
    %80 = vector.broadcast %cst_39 : f32 to vector<4x32xf32>
    %81 = arith.addf %80, %79 : vector<4x32xf32>
    %82 = arith.divf %80, %81 : vector<4x32xf32>
    %c0_40 = arith.constant 0 : index
    %c0_41 = arith.constant 0 : index
    %83 = vector.load %arg7[%c0_40, %c0_41] : memref<4x32xf32, #tpu.memory_space<vmem>>, vector<4x32xf32>
    %84 = arith.mulf %74, %83 : vector<4x32xf32>
    %85 = arith.mulf %68, %76 : vector<4x32xf32>
    %86 = arith.addf %84, %85 : vector<4x32xf32>
    %87 = math.tanh %86 : vector<4x32xf32>
    %88 = arith.mulf %82, %87 : vector<4x32xf32>
    %c0_42 = arith.constant 0 : index
    %c0_43 = arith.constant 0 : index
    %89 = vector.load %arg7[%c0_42, %c0_43] : memref<4x32xf32, #tpu.memory_space<vmem>>, vector<4x32xf32>
    tpu.vector_store %arg7[%c0_42, %c0_43], %86 {strides = array<i32>} : memref<4x32xf32, #tpu.memory_space<vmem>>, vector<4x32xf32>,
    %c0_44 = arith.constant 0 : index
    %c0_45 = arith.constant 0 : index
    %90 = vector.load %arg6[%c0_44, %c0_45] : memref<4x32xf32, #tpu.memory_space<vmem>>, vector<4x32xf32>
    tpu.vector_store %arg6[%c0_44, %c0_45], %88 {strides = array<i32>} : memref<4x32xf32, #tpu.memory_space<vmem>>, vector<4x32xf32>,
    %91 = vector.extract_strided_slice %88 {offsets = [0, 0], sizes = [2, 32], strides = [1, 1]} : vector<4x32xf32> to vector<2x32xf32>
    %c2_46 = arith.constant 2 : index
    %c0_47 = arith.constant 0 : index
    %92 = vector.load %arg4[%c2_46, %c0_47] : memref<16x64xf32, #tpu.memory_space<vmem>>, vector<2x32xf32>
    tpu.vector_store %arg4[%c2_46, %c0_47], %91 {strides = array<i32>} : memref<16x64xf32, #tpu.memory_space<vmem>>, vector<2x32xf32>,
    %93 = vector.extract_strided_slice %88 {offsets = [2, 0], sizes = [2, 32], strides = [1, 1]} : vector<4x32xf32> to vector<2x32xf32>
    %c12_48 = arith.constant 12 : index
    %c32_49 = arith.constant 32 : index
    %94 = vector.load %arg4[%c12_48, %c32_49] : memref<16x64xf32, #tpu.memory_space<vmem>>, vector<2x32xf32>
    tpu.vector_store %arg4[%c12_48, %c32_49], %93 {strides = array<i32>} : memref<16x64xf32, #tpu.memory_space<vmem>>, vector<2x32xf32>,
    %c0_50 = arith.constant 0 : index
    %c0_51 = arith.constant 0 : index
    %95 = vector.load %arg6[%c0_50, %c0_51] : memref<4x32xf32, #tpu.memory_space<vmem>>, vector<4x32xf32>
    %cst_52 = arith.constant dense<0.000000e+00> : vector<4x256xf32>
    %96 = tpu.matmul %95, %12, %cst_52 {dimension_numbers = #tpu.dot_dimension_numbers<[1], [0], [0], [1], [0, 0, 1, 1], [], []>} : vector<4x32xf32>, vector<32x256xf32>, vector<4x256xf32> -> vector<4x256xf32>
    %c4 = arith.constant 4 : index
    %c0_53 = arith.constant 0 : index
    %97 = vector.load %arg5[%c4, %c0_53] : memref<16x256xf32, #tpu.memory_space<vmem>>, vector<2x128xf32>
    %c10 = arith.constant 10 : index
    %c128_54 = arith.constant 128 : index
    %98 = vector.load %arg5[%c10, %c128_54] : memref<16x256xf32, #tpu.memory_space<vmem>>, vector<2x128xf32>
    %99 = vector.extract_strided_slice %96 {offsets = [0, 0], sizes = [2, 128], strides = [1, 1]} : vector<4x256xf32> to vector<2x128xf32>
    %100 = arith.addf %99, %97 : vector<2x128xf32>
    %101 = vector.extract_strided_slice %96 {offsets = [2, 128], sizes = [2, 128], strides = [1, 1]} : vector<4x256xf32> to vector<2x128xf32>
    %102 = arith.addf %101, %98 : vector<2x128xf32>
    %103 = tpu.concatenate %100, %102 in 0 : vector<2x128xf32>, vector<2x128xf32> -> vector<4x128xf32>
    %104 = vector.extract_strided_slice %103 {offsets = [0, 0], sizes = [4, 32], strides = [1, 1]} : vector<4x128xf32> to vector<4x32xf32>
    %105 = arith.negf %104 : vector<4x32xf32>
    %106 = math.exp %105 : vector<4x32xf32>
    %cst_55 = arith.constant 1.000000e+00 : f32
    %107 = vector.broadcast %cst_55 : f32 to vector<4x32xf32>
    %108 = arith.addf %107, %106 : vector<4x32xf32>
    %109 = arith.divf %107, %108 : vector<4x32xf32>
    %110 = vector.extract_strided_slice %103 {offsets = [0, 32], sizes = [4, 32], strides = [1, 1]} : vector<4x128xf32> to vector<4x32xf32>
    %111 = arith.negf %110 : vector<4x32xf32>
    %112 = math.exp %111 : vector<4x32xf32>
    %cst_56 = arith.constant 1.000000e+00 : f32
    %113 = vector.broadcast %cst_56 : f32 to vector<4x32xf32>
    %114 = arith.addf %113, %112 : vector<4x32xf32>
    %115 = arith.divf %113, %114 : vector<4x32xf32>
    %116 = vector.extract_strided_slice %103 {offsets = [0, 64], sizes = [4, 32], strides = [1, 1]} : vector<4x128xf32> to vector<4x32xf32>
    %117 = math.tanh %116 : vector<4x32xf32>
    %118 = vector.extract_strided_slice %103 {offsets = [0, 96], sizes = [4, 32], strides = [1, 1]} : vector<4x128xf32> to vector<4x32xf32>
    %119 = arith.negf %118 : vector<4x32xf32>
    %120 = math.exp %119 : vector<4x32xf32>
    %cst_57 = arith.constant 1.000000e+00 : f32
    %121 = vector.broadcast %cst_57 : f32 to vector<4x32xf32>
    %122 = arith.addf %121, %120 : vector<4x32xf32>
    %123 = arith.divf %121, %122 : vector<4x32xf32>
    %c0_58 = arith.constant 0 : index
    %c0_59 = arith.constant 0 : index
    %124 = vector.load %arg7[%c0_58, %c0_59] : memref<4x32xf32, #tpu.memory_space<vmem>>, vector<4x32xf32>
    %125 = arith.mulf %115, %124 : vector<4x32xf32>
    %126 = arith.mulf %109, %117 : vector<4x32xf32>
    %127 = arith.addf %125, %126 : vector<4x32xf32>
    %128 = math.tanh %127 : vector<4x32xf32>
    %129 = arith.mulf %123, %128 : vector<4x32xf32>
    %c0_60 = arith.constant 0 : index
    %c0_61 = arith.constant 0 : index
    %130 = vector.load %arg7[%c0_60, %c0_61] : memref<4x32xf32, #tpu.memory_space<vmem>>, vector<4x32xf32>
    tpu.vector_store %arg7[%c0_60, %c0_61], %127 {strides = array<i32>} : memref<4x32xf32, #tpu.memory_space<vmem>>, vector<4x32xf32>,
    %c0_62 = arith.constant 0 : index
    %c0_63 = arith.constant 0 : index
    %131 = vector.load %arg6[%c0_62, %c0_63] : memref<4x32xf32, #tpu.memory_space<vmem>>, vector<4x32xf32>
    tpu.vector_store %arg6[%c0_62, %c0_63], %129 {strides = array<i32>} : memref<4x32xf32, #tpu.memory_space<vmem>>, vector<4x32xf32>,
    %132 = vector.extract_strided_slice %129 {offsets = [0, 0], sizes = [2, 32], strides = [1, 1]} : vector<4x32xf32> to vector<2x32xf32>
    %c4_64 = arith.constant 4 : index
    %c0_65 = arith.constant 0 : index
    %133 = vector.load %arg4[%c4_64, %c0_65] : memref<16x64xf32, #tpu.memory_space<vmem>>, vector<2x32xf32>
    tpu.vector_store %arg4[%c4_64, %c0_65], %132 {strides = array<i32>} : memref<16x64xf32, #tpu.memory_space<vmem>>, vector<2x32xf32>,
    %134 = vector.extract_strided_slice %129 {offsets = [2, 0], sizes = [2, 32], strides = [1, 1]} : vector<4x32xf32> to vector<2x32xf32>
    %c10_66 = arith.constant 10 : index
    %c32_67 = arith.constant 32 : index
    %135 = vector.load %arg4[%c10_66, %c32_67] : memref<16x64xf32, #tpu.memory_space<vmem>>, vector<2x32xf32>
    tpu.vector_store %arg4[%c10_66, %c32_67], %134 {strides = array<i32>} : memref<16x64xf32, #tpu.memory_space<vmem>>, vector<2x32xf32>,
    %c0_68 = arith.constant 0 : index
    %c0_69 = arith.constant 0 : index
    %136 = vector.load %arg6[%c0_68, %c0_69] : memref<4x32xf32, #tpu.memory_space<vmem>>, vector<4x32xf32>
    %cst_70 = arith.constant dense<0.000000e+00> : vector<4x256xf32>
    %137 = tpu.matmul %136, %12, %cst_70 {dimension_numbers = #tpu.dot_dimension_numbers<[1], [0], [0], [1], [0, 0, 1, 1], [], []>} : vector<4x32xf32>, vector<32x256xf32>, vector<4x256xf32> -> vector<4x256xf32>
    %c6 = arith.constant 6 : index
    %c0_71 = arith.constant 0 : index
    %138 = vector.load %arg5[%c6, %c0_71] : memref<16x256xf32, #tpu.memory_space<vmem>>, vector<2x128xf32>
    %c8 = arith.constant 8 : index
    %c128_72 = arith.constant 128 : index
    %139 = vector.load %arg5[%c8, %c128_72] : memref<16x256xf32, #tpu.memory_space<vmem>>, vector<2x128xf32>
    %140 = vector.extract_strided_slice %137 {offsets = [0, 0], sizes = [2, 128], strides = [1, 1]} : vector<4x256xf32> to vector<2x128xf32>
    %141 = arith.addf %140, %138 : vector<2x128xf32>
    %142 = vector.extract_strided_slice %137 {offsets = [2, 128], sizes = [2, 128], strides = [1, 1]} : vector<4x256xf32> to vector<2x128xf32>
    %143 = arith.addf %142, %139 : vector<2x128xf32>
    %144 = tpu.concatenate %141, %143 in 0 : vector<2x128xf32>, vector<2x128xf32> -> vector<4x128xf32>
    %145 = vector.extract_strided_slice %144 {offsets = [0, 0], sizes = [4, 32], strides = [1, 1]} : vector<4x128xf32> to vector<4x32xf32>
    %146 = arith.negf %145 : vector<4x32xf32>
    %147 = math.exp %146 : vector<4x32xf32>
    %cst_73 = arith.constant 1.000000e+00 : f32
    %148 = vector.broadcast %cst_73 : f32 to vector<4x32xf32>
    %149 = arith.addf %148, %147 : vector<4x32xf32>
    %150 = arith.divf %148, %149 : vector<4x32xf32>
    %151 = vector.extract_strided_slice %144 {offsets = [0, 32], sizes = [4, 32], strides = [1, 1]} : vector<4x128xf32> to vector<4x32xf32>
    %152 = arith.negf %151 : vector<4x32xf32>
    %153 = math.exp %152 : vector<4x32xf32>
    %cst_74 = arith.constant 1.000000e+00 : f32
    %154 = vector.broadcast %cst_74 : f32 to vector<4x32xf32>
    %155 = arith.addf %154, %153 : vector<4x32xf32>
    %156 = arith.divf %154, %155 : vector<4x32xf32>
    %157 = vector.extract_strided_slice %144 {offsets = [0, 64], sizes = [4, 32], strides = [1, 1]} : vector<4x128xf32> to vector<4x32xf32>
    %158 = math.tanh %157 : vector<4x32xf32>
    %159 = vector.extract_strided_slice %144 {offsets = [0, 96], sizes = [4, 32], strides = [1, 1]} : vector<4x128xf32> to vector<4x32xf32>
    %160 = arith.negf %159 : vector<4x32xf32>
    %161 = math.exp %160 : vector<4x32xf32>
    %cst_75 = arith.constant 1.000000e+00 : f32
    %162 = vector.broadcast %cst_75 : f32 to vector<4x32xf32>
    %163 = arith.addf %162, %161 : vector<4x32xf32>
    %164 = arith.divf %162, %163 : vector<4x32xf32>
    %c0_76 = arith.constant 0 : index
    %c0_77 = arith.constant 0 : index
    %165 = vector.load %arg7[%c0_76, %c0_77] : memref<4x32xf32, #tpu.memory_space<vmem>>, vector<4x32xf32>
    %166 = arith.mulf %156, %165 : vector<4x32xf32>
    %167 = arith.mulf %150, %158 : vector<4x32xf32>
    %168 = arith.addf %166, %167 : vector<4x32xf32>
    %169 = math.tanh %168 : vector<4x32xf32>
    %170 = arith.mulf %164, %169 : vector<4x32xf32>
    %c0_78 = arith.constant 0 : index
    %c0_79 = arith.constant 0 : index
    %171 = vector.load %arg7[%c0_78, %c0_79] : memref<4x32xf32, #tpu.memory_space<vmem>>, vector<4x32xf32>
    tpu.vector_store %arg7[%c0_78, %c0_79], %168 {strides = array<i32>} : memref<4x32xf32, #tpu.memory_space<vmem>>, vector<4x32xf32>,
    %c0_80 = arith.constant 0 : index
    %c0_81 = arith.constant 0 : index
    %172 = vector.load %arg6[%c0_80, %c0_81] : memref<4x32xf32, #tpu.memory_space<vmem>>, vector<4x32xf32>
    tpu.vector_store %arg6[%c0_80, %c0_81], %170 {strides = array<i32>} : memref<4x32xf32, #tpu.memory_space<vmem>>, vector<4x32xf32>,
    %173 = vector.extract_strided_slice %170 {offsets = [0, 0], sizes = [2, 32], strides = [1, 1]} : vector<4x32xf32> to vector<2x32xf32>
    %c6_82 = arith.constant 6 : index
    %c0_83 = arith.constant 0 : index
    %174 = vector.load %arg4[%c6_82, %c0_83] : memref<16x64xf32, #tpu.memory_space<vmem>>, vector<2x32xf32>
    tpu.vector_store %arg4[%c6_82, %c0_83], %173 {strides = array<i32>} : memref<16x64xf32, #tpu.memory_space<vmem>>, vector<2x32xf32>,
    %175 = vector.extract_strided_slice %170 {offsets = [2, 0], sizes = [2, 32], strides = [1, 1]} : vector<4x32xf32> to vector<2x32xf32>
    %c8_84 = arith.constant 8 : index
    %c32_85 = arith.constant 32 : index
    %176 = vector.load %arg4[%c8_84, %c32_85] : memref<16x64xf32, #tpu.memory_space<vmem>>, vector<2x32xf32>
    tpu.vector_store %arg4[%c8_84, %c32_85], %175 {strides = array<i32>} : memref<16x64xf32, #tpu.memory_space<vmem>>, vector<2x32xf32>,
    %c0_86 = arith.constant 0 : index
    %c0_87 = arith.constant 0 : index
    %177 = vector.load %arg6[%c0_86, %c0_87] : memref<4x32xf32, #tpu.memory_space<vmem>>, vector<4x32xf32>
    %cst_88 = arith.constant dense<0.000000e+00> : vector<4x256xf32>
    %178 = tpu.matmul %177, %12, %cst_88 {dimension_numbers = #tpu.dot_dimension_numbers<[1], [0], [0], [1], [0, 0, 1, 1], [], []>} : vector<4x32xf32>, vector<32x256xf32>, vector<4x256xf32> -> vector<4x256xf32>
    %c8_89 = arith.constant 8 : index
    %c0_90 = arith.constant 0 : index
    %179 = vector.load %arg5[%c8_89, %c0_90] : memref<16x256xf32, #tpu.memory_space<vmem>>, vector<2x128xf32>
    %c6_91 = arith.constant 6 : index
    %c128_92 = arith.constant 128 : index
    %180 = vector.load %arg5[%c6_91, %c128_92] : memref<16x256xf32, #tpu.memory_space<vmem>>, vector<2x128xf32>
    %181 = vector.extract_strided_slice %178 {offsets = [0, 0], sizes = [2, 128], strides = [1, 1]} : vector<4x256xf32> to vector<2x128xf32>
    %182 = arith.addf %181, %179 : vector<2x128xf32>
    %183 = vector.extract_strided_slice %178 {offsets = [2, 128], sizes = [2, 128], strides = [1, 1]} : vector<4x256xf32> to vector<2x128xf32>
    %184 = arith.addf %183, %180 : vector<2x128xf32>
    %185 = tpu.concatenate %182, %184 in 0 : vector<2x128xf32>, vector<2x128xf32> -> vector<4x128xf32>
    %186 = vector.extract_strided_slice %185 {offsets = [0, 0], sizes = [4, 32], strides = [1, 1]} : vector<4x128xf32> to vector<4x32xf32>
    %187 = arith.negf %186 : vector<4x32xf32>
    %188 = math.exp %187 : vector<4x32xf32>
    %cst_93 = arith.constant 1.000000e+00 : f32
    %189 = vector.broadcast %cst_93 : f32 to vector<4x32xf32>
    %190 = arith.addf %189, %188 : vector<4x32xf32>
    %191 = arith.divf %189, %190 : vector<4x32xf32>
    %192 = vector.extract_strided_slice %185 {offsets = [0, 32], sizes = [4, 32], strides = [1, 1]} : vector<4x128xf32> to vector<4x32xf32>
    %193 = arith.negf %192 : vector<4x32xf32>
    %194 = math.exp %193 : vector<4x32xf32>
    %cst_94 = arith.constant 1.000000e+00 : f32
    %195 = vector.broadcast %cst_94 : f32 to vector<4x32xf32>
    %196 = arith.addf %195, %194 : vector<4x32xf32>
    %197 = arith.divf %195, %196 : vector<4x32xf32>
    %198 = vector.extract_strided_slice %185 {offsets = [0, 64], sizes = [4, 32], strides = [1, 1]} : vector<4x128xf32> to vector<4x32xf32>
    %199 = math.tanh %198 : vector<4x32xf32>
    %200 = vector.extract_strided_slice %185 {offsets = [0, 96], sizes = [4, 32], strides = [1, 1]} : vector<4x128xf32> to vector<4x32xf32>
    %201 = arith.negf %200 : vector<4x32xf32>
    %202 = math.exp %201 : vector<4x32xf32>
    %cst_95 = arith.constant 1.000000e+00 : f32
    %203 = vector.broadcast %cst_95 : f32 to vector<4x32xf32>
    %204 = arith.addf %203, %202 : vector<4x32xf32>
    %205 = arith.divf %203, %204 : vector<4x32xf32>
    %c0_96 = arith.constant 0 : index
    %c0_97 = arith.constant 0 : index
    %206 = vector.load %arg7[%c0_96, %c0_97] : memref<4x32xf32, #tpu.memory_space<vmem>>, vector<4x32xf32>
    %207 = arith.mulf %197, %206 : vector<4x32xf32>
    %208 = arith.mulf %191, %199 : vector<4x32xf32>
    %209 = arith.addf %207, %208 : vector<4x32xf32>
    %210 = math.tanh %209 : vector<4x32xf32>
    %211 = arith.mulf %205, %210 : vector<4x32xf32>
    %c0_98 = arith.constant 0 : index
    %c0_99 = arith.constant 0 : index
    %212 = vector.load %arg7[%c0_98, %c0_99] : memref<4x32xf32, #tpu.memory_space<vmem>>, vector<4x32xf32>
    tpu.vector_store %arg7[%c0_98, %c0_99], %209 {strides = array<i32>} : memref<4x32xf32, #tpu.memory_space<vmem>>, vector<4x32xf32>,
    %c0_100 = arith.constant 0 : index
    %c0_101 = arith.constant 0 : index
    %213 = vector.load %arg6[%c0_100, %c0_101] : memref<4x32xf32, #tpu.memory_space<vmem>>, vector<4x32xf32>
    tpu.vector_store %arg6[%c0_100, %c0_101], %211 {strides = array<i32>} : memref<4x32xf32, #tpu.memory_space<vmem>>, vector<4x32xf32>,
    %214 = vector.extract_strided_slice %211 {offsets = [0, 0], sizes = [2, 32], strides = [1, 1]} : vector<4x32xf32> to vector<2x32xf32>
    %c8_102 = arith.constant 8 : index
    %c0_103 = arith.constant 0 : index
    %215 = vector.load %arg4[%c8_102, %c0_103] : memref<16x64xf32, #tpu.memory_space<vmem>>, vector<2x32xf32>
    tpu.vector_store %arg4[%c8_102, %c0_103], %214 {strides = array<i32>} : memref<16x64xf32, #tpu.memory_space<vmem>>, vector<2x32xf32>,
    %216 = vector.extract_strided_slice %211 {offsets = [2, 0], sizes = [2, 32], strides = [1, 1]} : vector<4x32xf32> to vector<2x32xf32>
    %c6_104 = arith.constant 6 : index
    %c32_105 = arith.constant 32 : index
    %217 = vector.load %arg4[%c6_104, %c32_105] : memref<16x64xf32, #tpu.memory_space<vmem>>, vector<2x32xf32>
    tpu.vector_store %arg4[%c6_104, %c32_105], %216 {strides = array<i32>} : memref<16x64xf32, #tpu.memory_space<vmem>>, vector<2x32xf32>,
    %c0_106 = arith.constant 0 : index
    %c0_107 = arith.constant 0 : index
    %218 = vector.load %arg6[%c0_106, %c0_107] : memref<4x32xf32, #tpu.memory_space<vmem>>, vector<4x32xf32>
    %cst_108 = arith.constant dense<0.000000e+00> : vector<4x256xf32>
    %219 = tpu.matmul %218, %12, %cst_108 {dimension_numbers = #tpu.dot_dimension_numbers<[1], [0], [0], [1], [0, 0, 1, 1], [], []>} : vector<4x32xf32>, vector<32x256xf32>, vector<4x256xf32> -> vector<4x256xf32>
    %c10_109 = arith.constant 10 : index
    %c0_110 = arith.constant 0 : index
    %220 = vector.load %arg5[%c10_109, %c0_110] : memref<16x256xf32, #tpu.memory_space<vmem>>, vector<2x128xf32>
    %c4_111 = arith.constant 4 : index
    %c128_112 = arith.constant 128 : index
    %221 = vector.load %arg5[%c4_111, %c128_112] : memref<16x256xf32, #tpu.memory_space<vmem>>, vector<2x128xf32>
    %222 = vector.extract_strided_slice %219 {offsets = [0, 0], sizes = [2, 128], strides = [1, 1]} : vector<4x256xf32> to vector<2x128xf32>
    %223 = arith.addf %222, %220 : vector<2x128xf32>
    %224 = vector.extract_strided_slice %219 {offsets = [2, 128], sizes = [2, 128], strides = [1, 1]} : vector<4x256xf32> to vector<2x128xf32>
    %225 = arith.addf %224, %221 : vector<2x128xf32>
    %226 = tpu.concatenate %223, %225 in 0 : vector<2x128xf32>, vector<2x128xf32> -> vector<4x128xf32>
    %227 = vector.extract_strided_slice %226 {offsets = [0, 0], sizes = [4, 32], strides = [1, 1]} : vector<4x128xf32> to vector<4x32xf32>
    %228 = arith.negf %227 : vector<4x32xf32>
    %229 = math.exp %228 : vector<4x32xf32>
    %cst_113 = arith.constant 1.000000e+00 : f32
    %230 = vector.broadcast %cst_113 : f32 to vector<4x32xf32>
    %231 = arith.addf %230, %229 : vector<4x32xf32>
    %232 = arith.divf %230, %231 : vector<4x32xf32>
    %233 = vector.extract_strided_slice %226 {offsets = [0, 32], sizes = [4, 32], strides = [1, 1]} : vector<4x128xf32> to vector<4x32xf32>
    %234 = arith.negf %233 : vector<4x32xf32>
    %235 = math.exp %234 : vector<4x32xf32>
    %cst_114 = arith.constant 1.000000e+00 : f32
    %236 = vector.broadcast %cst_114 : f32 to vector<4x32xf32>
    %237 = arith.addf %236, %235 : vector<4x32xf32>
    %238 = arith.divf %236, %237 : vector<4x32xf32>
    %239 = vector.extract_strided_slice %226 {offsets = [0, 64], sizes = [4, 32], strides = [1, 1]} : vector<4x128xf32> to vector<4x32xf32>
    %240 = math.tanh %239 : vector<4x32xf32>
    %241 = vector.extract_strided_slice %226 {offsets = [0, 96], sizes = [4, 32], strides = [1, 1]} : vector<4x128xf32> to vector<4x32xf32>
    %242 = arith.negf %241 : vector<4x32xf32>
    %243 = math.exp %242 : vector<4x32xf32>
    %cst_115 = arith.constant 1.000000e+00 : f32
    %244 = vector.broadcast %cst_115 : f32 to vector<4x32xf32>
    %245 = arith.addf %244, %243 : vector<4x32xf32>
    %246 = arith.divf %244, %245 : vector<4x32xf32>
    %c0_116 = arith.constant 0 : index
    %c0_117 = arith.constant 0 : index
    %247 = vector.load %arg7[%c0_116, %c0_117] : memref<4x32xf32, #tpu.memory_space<vmem>>, vector<4x32xf32>
    %248 = arith.mulf %238, %247 : vector<4x32xf32>
    %249 = arith.mulf %232, %240 : vector<4x32xf32>
    %250 = arith.addf %248, %249 : vector<4x32xf32>
    %251 = math.tanh %250 : vector<4x32xf32>
    %252 = arith.mulf %246, %251 : vector<4x32xf32>
    %c0_118 = arith.constant 0 : index
    %c0_119 = arith.constant 0 : index
    %253 = vector.load %arg7[%c0_118, %c0_119] : memref<4x32xf32, #tpu.memory_space<vmem>>, vector<4x32xf32>
    tpu.vector_store %arg7[%c0_118, %c0_119], %250 {strides = array<i32>} : memref<4x32xf32, #tpu.memory_space<vmem>>, vector<4x32xf32>,
    %c0_120 = arith.constant 0 : index
    %c0_121 = arith.constant 0 : index
    %254 = vector.load %arg6[%c0_120, %c0_121] : memref<4x32xf32, #tpu.memory_space<vmem>>, vector<4x32xf32>
    tpu.vector_store %arg6[%c0_120, %c0_121], %252 {strides = array<i32>} : memref<4x32xf32, #tpu.memory_space<vmem>>, vector<4x32xf32>,
    %255 = vector.extract_strided_slice %252 {offsets = [0, 0], sizes = [2, 32], strides = [1, 1]} : vector<4x32xf32> to vector<2x32xf32>
    %c10_122 = arith.constant 10 : index
    %c0_123 = arith.constant 0 : index
    %256 = vector.load %arg4[%c10_122, %c0_123] : memref<16x64xf32, #tpu.memory_space<vmem>>, vector<2x32xf32>
    tpu.vector_store %arg4[%c10_122, %c0_123], %255 {strides = array<i32>} : memref<16x64xf32, #tpu.memory_space<vmem>>, vector<2x32xf32>,
    %257 = vector.extract_strided_slice %252 {offsets = [2, 0], sizes = [2, 32], strides = [1, 1]} : vector<4x32xf32> to vector<2x32xf32>
    %c4_124 = arith.constant 4 : index
    %c32_125 = arith.constant 32 : index
    %258 = vector.load %arg4[%c4_124, %c32_125] : memref<16x64xf32, #tpu.memory_space<vmem>>, vector<2x32xf32>
    tpu.vector_store %arg4[%c4_124, %c32_125], %257 {strides = array<i32>} : memref<16x64xf32, #tpu.memory_space<vmem>>, vector<2x32xf32>,
    %c0_126 = arith.constant 0 : index
    %c0_127 = arith.constant 0 : index
    %259 = vector.load %arg6[%c0_126, %c0_127] : memref<4x32xf32, #tpu.memory_space<vmem>>, vector<4x32xf32>
    %cst_128 = arith.constant dense<0.000000e+00> : vector<4x256xf32>
    %260 = tpu.matmul %259, %12, %cst_128 {dimension_numbers = #tpu.dot_dimension_numbers<[1], [0], [0], [1], [0, 0, 1, 1], [], []>} : vector<4x32xf32>, vector<32x256xf32>, vector<4x256xf32> -> vector<4x256xf32>
    %c12_129 = arith.constant 12 : index
    %c0_130 = arith.constant 0 : index
    %261 = vector.load %arg5[%c12_129, %c0_130] : memref<16x256xf32, #tpu.memory_space<vmem>>, vector<2x128xf32>
    %c2_131 = arith.constant 2 : index
    %c128_132 = arith.constant 128 : index
    %262 = vector.load %arg5[%c2_131, %c128_132] : memref<16x256xf32, #tpu.memory_space<vmem>>, vector<2x128xf32>
    %263 = vector.extract_strided_slice %260 {offsets = [0, 0], sizes = [2, 128], strides = [1, 1]} : vector<4x256xf32> to vector<2x128xf32>
    %264 = arith.addf %263, %261 : vector<2x128xf32>
    %265 = vector.extract_strided_slice %260 {offsets = [2, 128], sizes = [2, 128], strides = [1, 1]} : vector<4x256xf32> to vector<2x128xf32>
    %266 = arith.addf %265, %262 : vector<2x128xf32>
    %267 = tpu.concatenate %264, %266 in 0 : vector<2x128xf32>, vector<2x128xf32> -> vector<4x128xf32>
    %268 = vector.extract_strided_slice %267 {offsets = [0, 0], sizes = [4, 32], strides = [1, 1]} : vector<4x128xf32> to vector<4x32xf32>
    %269 = arith.negf %268 : vector<4x32xf32>
    %270 = math.exp %269 : vector<4x32xf32>
    %cst_133 = arith.constant 1.000000e+00 : f32
    %271 = vector.broadcast %cst_133 : f32 to vector<4x32xf32>
    %272 = arith.addf %271, %270 : vector<4x32xf32>
    %273 = arith.divf %271, %272 : vector<4x32xf32>
    %274 = vector.extract_strided_slice %267 {offsets = [0, 32], sizes = [4, 32], strides = [1, 1]} : vector<4x128xf32> to vector<4x32xf32>
    %275 = arith.negf %274 : vector<4x32xf32>
    %276 = math.exp %275 : vector<4x32xf32>
    %cst_134 = arith.constant 1.000000e+00 : f32
    %277 = vector.broadcast %cst_134 : f32 to vector<4x32xf32>
    %278 = arith.addf %277, %276 : vector<4x32xf32>
    %279 = arith.divf %277, %278 : vector<4x32xf32>
    %280 = vector.extract_strided_slice %267 {offsets = [0, 64], sizes = [4, 32], strides = [1, 1]} : vector<4x128xf32> to vector<4x32xf32>
    %281 = math.tanh %280 : vector<4x32xf32>
    %282 = vector.extract_strided_slice %267 {offsets = [0, 96], sizes = [4, 32], strides = [1, 1]} : vector<4x128xf32> to vector<4x32xf32>
    %283 = arith.negf %282 : vector<4x32xf32>
    %284 = math.exp %283 : vector<4x32xf32>
    %cst_135 = arith.constant 1.000000e+00 : f32
    %285 = vector.broadcast %cst_135 : f32 to vector<4x32xf32>
    %286 = arith.addf %285, %284 : vector<4x32xf32>
    %287 = arith.divf %285, %286 : vector<4x32xf32>
    %c0_136 = arith.constant 0 : index
    %c0_137 = arith.constant 0 : index
    %288 = vector.load %arg7[%c0_136, %c0_137] : memref<4x32xf32, #tpu.memory_space<vmem>>, vector<4x32xf32>
    %289 = arith.mulf %279, %288 : vector<4x32xf32>
    %290 = arith.mulf %273, %281 : vector<4x32xf32>
    %291 = arith.addf %289, %290 : vector<4x32xf32>
    %292 = math.tanh %291 : vector<4x32xf32>
    %293 = arith.mulf %287, %292 : vector<4x32xf32>
    %c0_138 = arith.constant 0 : index
    %c0_139 = arith.constant 0 : index
    %294 = vector.load %arg7[%c0_138, %c0_139] : memref<4x32xf32, #tpu.memory_space<vmem>>, vector<4x32xf32>
    tpu.vector_store %arg7[%c0_138, %c0_139], %291 {strides = array<i32>} : memref<4x32xf32, #tpu.memory_space<vmem>>, vector<4x32xf32>,
    %c0_140 = arith.constant 0 : index
    %c0_141 = arith.constant 0 : index
    %295 = vector.load %arg6[%c0_140, %c0_141] : memref<4x32xf32, #tpu.memory_space<vmem>>, vector<4x32xf32>
    tpu.vector_store %arg6[%c0_140, %c0_141], %293 {strides = array<i32>} : memref<4x32xf32, #tpu.memory_space<vmem>>, vector<4x32xf32>,
    %296 = vector.extract_strided_slice %293 {offsets = [0, 0], sizes = [2, 32], strides = [1, 1]} : vector<4x32xf32> to vector<2x32xf32>
    %c12_142 = arith.constant 12 : index
    %c0_143 = arith.constant 0 : index
    %297 = vector.load %arg4[%c12_142, %c0_143] : memref<16x64xf32, #tpu.memory_space<vmem>>, vector<2x32xf32>
    tpu.vector_store %arg4[%c12_142, %c0_143], %296 {strides = array<i32>} : memref<16x64xf32, #tpu.memory_space<vmem>>, vector<2x32xf32>,
    %298 = vector.extract_strided_slice %293 {offsets = [2, 0], sizes = [2, 32], strides = [1, 1]} : vector<4x32xf32> to vector<2x32xf32>
    %c2_144 = arith.constant 2 : index
    %c32_145 = arith.constant 32 : index
    %299 = vector.load %arg4[%c2_144, %c32_145] : memref<16x64xf32, #tpu.memory_space<vmem>>, vector<2x32xf32>
    tpu.vector_store %arg4[%c2_144, %c32_145], %298 {strides = array<i32>} : memref<16x64xf32, #tpu.memory_space<vmem>>, vector<2x32xf32>,
    %c0_146 = arith.constant 0 : index
    %c0_147 = arith.constant 0 : index
    %300 = vector.load %arg6[%c0_146, %c0_147] : memref<4x32xf32, #tpu.memory_space<vmem>>, vector<4x32xf32>
    %cst_148 = arith.constant dense<0.000000e+00> : vector<4x256xf32>
    %301 = tpu.matmul %300, %12, %cst_148 {dimension_numbers = #tpu.dot_dimension_numbers<[1], [0], [0], [1], [0, 0, 1, 1], [], []>} : vector<4x32xf32>, vector<32x256xf32>, vector<4x256xf32> -> vector<4x256xf32>
    %c14_149 = arith.constant 14 : index
    %c0_150 = arith.constant 0 : index
    %302 = vector.load %arg5[%c14_149, %c0_150] : memref<16x256xf32, #tpu.memory_space<vmem>>, vector<2x128xf32>
    %c0_151 = arith.constant 0 : index
    %c128_152 = arith.constant 128 : index
    %303 = vector.load %arg5[%c0_151, %c128_152] : memref<16x256xf32, #tpu.memory_space<vmem>>, vector<2x128xf32>
    %304 = vector.extract_strided_slice %301 {offsets = [0, 0], sizes = [2, 128], strides = [1, 1]} : vector<4x256xf32> to vector<2x128xf32>
    %305 = arith.addf %304, %302 : vector<2x128xf32>
    %306 = vector.extract_strided_slice %301 {offsets = [2, 128], sizes = [2, 128], strides = [1, 1]} : vector<4x256xf32> to vector<2x128xf32>
    %307 = arith.addf %306, %303 : vector<2x128xf32>
    %308 = tpu.concatenate %305, %307 in 0 : vector<2x128xf32>, vector<2x128xf32> -> vector<4x128xf32>
    %309 = vector.extract_strided_slice %308 {offsets = [0, 0], sizes = [4, 32], strides = [1, 1]} : vector<4x128xf32> to vector<4x32xf32>
    %310 = arith.negf %309 : vector<4x32xf32>
    %311 = math.exp %310 : vector<4x32xf32>
    %cst_153 = arith.constant 1.000000e+00 : f32
    %312 = vector.broadcast %cst_153 : f32 to vector<4x32xf32>
    %313 = arith.addf %312, %311 : vector<4x32xf32>
    %314 = arith.divf %312, %313 : vector<4x32xf32>
    %315 = vector.extract_strided_slice %308 {offsets = [0, 32], sizes = [4, 32], strides = [1, 1]} : vector<4x128xf32> to vector<4x32xf32>
    %316 = arith.negf %315 : vector<4x32xf32>
    %317 = math.exp %316 : vector<4x32xf32>
    %cst_154 = arith.constant 1.000000e+00 : f32
    %318 = vector.broadcast %cst_154 : f32 to vector<4x32xf32>
    %319 = arith.addf %318, %317 : vector<4x32xf32>
    %320 = arith.divf %318, %319 : vector<4x32xf32>
    %321 = vector.extract_strided_slice %308 {offsets = [0, 64], sizes = [4, 32], strides = [1, 1]} : vector<4x128xf32> to vector<4x32xf32>
    %322 = math.tanh %321 : vector<4x32xf32>
    %323 = vector.extract_strided_slice %308 {offsets = [0, 96], sizes = [4, 32], strides = [1, 1]} : vector<4x128xf32> to vector<4x32xf32>
    %324 = arith.negf %323 : vector<4x32xf32>
    %325 = math.exp %324 : vector<4x32xf32>
    %cst_155 = arith.constant 1.000000e+00 : f32
    %326 = vector.broadcast %cst_155 : f32 to vector<4x32xf32>
    %327 = arith.addf %326, %325 : vector<4x32xf32>
    %328 = arith.divf %326, %327 : vector<4x32xf32>
    %c0_156 = arith.constant 0 : index
    %c0_157 = arith.constant 0 : index
    %329 = vector.load %arg7[%c0_156, %c0_157] : memref<4x32xf32, #tpu.memory_space<vmem>>, vector<4x32xf32>
    %330 = arith.mulf %320, %329 : vector<4x32xf32>
    %331 = arith.mulf %314, %322 : vector<4x32xf32>
    %332 = arith.addf %330, %331 : vector<4x32xf32>
    %333 = math.tanh %332 : vector<4x32xf32>
    %334 = arith.mulf %328, %333 : vector<4x32xf32>
    %c0_158 = arith.constant 0 : index
    %c0_159 = arith.constant 0 : index
    %335 = vector.load %arg7[%c0_158, %c0_159] : memref<4x32xf32, #tpu.memory_space<vmem>>, vector<4x32xf32>
    tpu.vector_store %arg7[%c0_158, %c0_159], %332 {strides = array<i32>} : memref<4x32xf32, #tpu.memory_space<vmem>>, vector<4x32xf32>,
    %c0_160 = arith.constant 0 : index
    %c0_161 = arith.constant 0 : index
    %336 = vector.load %arg6[%c0_160, %c0_161] : memref<4x32xf32, #tpu.memory_space<vmem>>, vector<4x32xf32>
    tpu.vector_store %arg6[%c0_160, %c0_161], %334 {strides = array<i32>} : memref<4x32xf32, #tpu.memory_space<vmem>>, vector<4x32xf32>,
    %337 = vector.extract_strided_slice %334 {offsets = [0, 0], sizes = [2, 32], strides = [1, 1]} : vector<4x32xf32> to vector<2x32xf32>
    %c14_162 = arith.constant 14 : index
    %c0_163 = arith.constant 0 : index
    %338 = vector.load %arg4[%c14_162, %c0_163] : memref<16x64xf32, #tpu.memory_space<vmem>>, vector<2x32xf32>
    tpu.vector_store %arg4[%c14_162, %c0_163], %337 {strides = array<i32>} : memref<16x64xf32, #tpu.memory_space<vmem>>, vector<2x32xf32>,
    %339 = vector.extract_strided_slice %334 {offsets = [2, 0], sizes = [2, 32], strides = [1, 1]} : vector<4x32xf32> to vector<2x32xf32>
    %c0_164 = arith.constant 0 : index
    %c32_165 = arith.constant 32 : index
    %340 = vector.load %arg4[%c0_164, %c32_165] : memref<16x64xf32, #tpu.memory_space<vmem>>, vector<2x32xf32>
    tpu.vector_store %arg4[%c0_164, %c32_165], %339 {strides = array<i32>} : memref<16x64xf32, #tpu.memory_space<vmem>>, vector<2x32xf32>,
    return
  }
}

</mosaic_0001>

<llo_original>
// kernel: tpu_custom_call.1
$region0: #{tpu_custom_call.1}
  #allocation0 [shape = 'u32[]', space=smem, size = 0x4, offset = 0x4, fixed_abs, tag = 'smem constant byte address 0x4 - core index']
  #allocation1 [shape = 'u32[144,128]{1,0:T(1,128)}', space=vmem, size = 0x12000, scoped, tag = 'internal scratch']
  #allocation2 [shape = 'f32[16,256]{1,0:T(8,128)}', space=vmem, size = 0x4000, scoped, tag = 'scratch operand']
  #allocation3 [shape = 'f32[4,32]{1,0:T(4,128)}', space=vmem, size = 0x800, scoped, tag = 'scratch operand']
  #allocation4 [shape = 'f32[4,32]{1,0:T(4,128)}', space=vmem, size = 0x800, scoped, tag = 'scratch operand']
  %s0 = inlined_call_operand.hbm [shape: f32[16,16], index: 0, kind: input, shape index: {}]
  %s1 = inlined_call_operand.hbm [shape: bf16[16,256], index: 1, kind: input, shape index: {}]
  %s2 = inlined_call_operand.vmem [shape: f32[1,256], index: 2, kind: input, shape index: {}]
  %s3 = inlined_call_operand.hbm [shape: f32[32,256], index: 3, kind: input, shape index: {}]
  %s4 = inlined_call_operand.hbm [shape: f32[16,64], index: 4, kind: output, shape index: {}]
  %s5 = sld [smem:[#allocation0]]
  $region38: #{tpu_custom_call.1} parent=0
    _
  %s7 = ssub.s32 1, %s5
  %s8 = scalar_select 0, %s7, %s5
  $region1: #{tpu_custom_call.1} parent=0
    #allocation5 [shape = 'u8[8192]{0}', space=vmem, size = 0x2000, scoped, tag = 'input window, operand 0, single buffered']
    #allocation6 [shape = 's32[1]{0}', space=sflag, size = 0x4, scoped, tag = 'scoped memory for tpu_custom_call.1']
    #allocation7 [shape = 's32[1]{0}', space=sflag, size = 0x4, scoped, tag = 'scoped memory for tpu_custom_call.1']
    #allocation8 [shape = 'u8[8192]{0}', space=vmem, size = 0x2000, scoped, tag = 'input window, operand 1, single buffered']
    #allocation9 [shape = 's32[1]{0}', space=sflag, size = 0x4, scoped, tag = 'scoped memory for tpu_custom_call.1']
    #allocation10 [shape = 'u8[32768]{0}', space=vmem, size = 0x8000, scoped, tag = 'input window, operand 3, single buffered']
    #allocation11 [shape = 'u8[8192]{0}', space=vmem, size = 0x2000, scoped, tag = 'output window, operand 0, single buffered']
    %9 = vsyncpa [#allocation6], 0
    %10 = vsyncpa [#allocation9], 0
    %11 = vsyncpa [#allocation7], 0
    // Predicated region
    $region2: #{tpu_custom_call.1} parent=1 // pred_check
      _
    $region3: #{tpu_custom_call.1} parent=1 // pred_check_branch
      %13 = sbr.rel (0) target = $region5
    $region4: #{tpu_custom_call.1} parent=1 // pred_region
      %s15 = ssub.s32 256, 256
      %16 = vsyncadd [#allocation6], %s15
      %s17 = sshll.u32 [#allocation5], 4
      %s18 = int_to_ptr.vmem [resolvable:$true] %s17
      %23 = dma.hbm_to_vmem [thread:$0]  %s0, 256, %s18, [#allocation6], 128, 128, 8
    $region5: #{tpu_custom_call.1} parent=1 // pred_fallthru
      _
    // Predicated region
    $region6: #{tpu_custom_call.1} parent=1 // pred_check
      _
    $region7: #{tpu_custom_call.1} parent=1 // pred_check_branch
      %25 = sbr.rel (0) target = $region9
    $region8: #{tpu_custom_call.1} parent=1 // pred_region
      %s27 = ssub.s32 256, 256
      %28 = vsyncadd [#allocation9], %s27
      %s29 = sshll.u32 [#allocation8], 4
      %s30 = int_to_ptr.vmem [resolvable:$true] %s29
      %35 = dma.hbm_to_vmem [thread:$0]  %s1, 256, %s30, [#allocation9], 128, 128, 8
    $region9: #{tpu_custom_call.1} parent=1 // pred_fallthru
      _
    // Predicated region
    $region10: #{tpu_custom_call.1} parent=1 // pred_check
      _
    $region11: #{tpu_custom_call.1} parent=1 // pred_check_branch
      %37 = sbr.rel (0) target = $region13
    $region12: #{tpu_custom_call.1} parent=1 // pred_region
      _
    $region13: #{tpu_custom_call.1} parent=1 // pred_fallthru
      _
    // Predicated region
    $region14: #{tpu_custom_call.1} parent=1 // pred_check
      _
    $region15: #{tpu_custom_call.1} parent=1 // pred_check_branch
      %39 = sbr.rel (0) target = $region17
    $region16: #{tpu_custom_call.1} parent=1 // pred_region
      %s41 = ssub.s32 1024, 1024
      %42 = vsyncadd [#allocation9], %s41
      %s43 = sshll.u32 [#allocation10], 4
      %s44 = int_to_ptr.vmem [resolvable:$true] %s43
      %49 = dma.hbm_to_vmem [thread:$0]  %s3, 1024, %s44, [#allocation9], 256, 256, 16
    $region17: #{tpu_custom_call.1} parent=1 // pred_fallthru
      _
    // Predicated region
    $region18: #{tpu_custom_call.1} parent=1 // pred_check
      _
    $region19: #{tpu_custom_call.1} parent=1 // pred_check_branch
      %51 = sbr.rel (0) target = $region21
    $region20: #{tpu_custom_call.1} parent=1 // pred_region
      %52 = dma.done [#allocation6], 256
    $region21: #{tpu_custom_call.1} parent=1 // pred_fallthru
      _
    // Predicated region
    $region22: #{tpu_custom_call.1} parent=1 // pred_check
      _
    $region23: #{tpu_custom_call.1} parent=1 // pred_check_branch
      %54 = sbr.rel (0) target = $region25
    $region24: #{tpu_custom_call.1} parent=1 // pred_region
      %55 = dma.done [#allocation9], 256
    $region25: #{tpu_custom_call.1} parent=1 // pred_fallthru
      _
    // Predicated region
    $region26: #{tpu_custom_call.1} parent=1 // pred_check
      _
    $region27: #{tpu_custom_call.1} parent=1 // pred_check_branch
      %57 = sbr.rel (0) target = $region29
    $region28: #{tpu_custom_call.1} parent=1 // pred_region
      %58 = dma.done [#allocation9], 1024
    $region29: #{tpu_custom_call.1} parent=1 // pred_fallthru
      _
    %v60 = vld [vmem:[#allocation5] sm:$0xff]
    %v61 = vld [vmem:[#allocation5 + $0x8] sm:$0xff]
    %v62 = vpack.c.bf16 %v61, %v60
    %v63 = vld [vmem:[#allocation8] sm:$0xff]
    %v64 = vld [vmem:[#allocation8 + $0x8] sm:$0xff]
    %v65 = vld [vmem:[%s2] sm:$0x3]
    %v67 = vlaneseq
    %v68 = vshrl.u32 %v67, 7
    %v69 = vsub.s32 0, %v68
    %v70 = vrot.slane %v65, %v69
    %v71 = vlaneseq
    %v72 = vshrl.u32 %v71, 7
    %v73 = vsub.s32 1, %v72
    %v74 = vrot.slane %v65, %v73
    %v79 = vunpack.c.l.b16 %v63
    %v80 = vunpack.c.h.b16 %v63
    %v81 = vunpack.c.l.b16 %v64
    %v82 = vunpack.c.h.b16 %v64
    %v83 = vpack.c.b16 %v81, %v79
    %v84 = vpack.c.b16 %v82, %v80
    %vm87 = vcmask 130048
    %v89 = vsel %vm87, %v62, 0
    %91 = vmatprep.subr.bf16.mxu0 %v84
    %92 = vmatpush1.bf16.msra.mxu0 %v83
    %93 = vmatprep.subr.bf16.mxu0 0
    %94 = vmatpush1.bf16.msra.mxu0 0
    %95 = vmatprep.subr.bf16.mxu0 0
    %96 = vmatpush1.bf16.msra.mxu0 0
    %97 = vmatprep.subr.bf16.mxu0 0
    %98 = vmatpush1.bf16.msra.mxu0 0
    %99 = vmatprep.subr.bf16.mxu0 0
    %100 = vmatpush1.bf16.msra.mxu0 0
    %101 = vmatprep.subr.bf16.mxu0 0
    %102 = vmatpush1.bf16.msra.mxu0 0
    %103 = vmatprep.subr.bf16.mxu0 0
    %104 = vmatpush1.bf16.msra.mxu0 0
    %105 = vmatprep.subr.bf16.mxu0 0
    %106 = vmatpush1.bf16.msra.mxu0 0
    %107 = vmatprep.subr.bf16.mxu0 0
    %108 = vmatpush1.bf16.msra.mxu0 0
    %109 = vmatprep.subr.bf16.mxu0 0
    %110 = vmatpush1.bf16.msra.mxu0 0
    %111 = vmatprep.subr.bf16.mxu0 0
    %112 = vmatpush1.bf16.msra.mxu0 0
    %113 = vmatprep.subr.bf16.mxu0 0
    %114 = vmatpush1.bf16.msra.mxu0 0
    %115 = vmatprep.subr.bf16.mxu0 0
    %116 = vmatpush1.bf16.msra.mxu0 0
    %117 = vmatprep.subr.bf16.mxu0 0
    %118 = vmatpush1.bf16.msra.mxu0 0
    %119 = vmatprep.subr.bf16.mxu0 0
    %120 = vmatpush1.bf16.msra.mxu0 0
    %121 = vmatprep.subr.bf16.mxu0 0
    %122 = vmatpush1.bf16.msra.mxu0 0
    %123 = vmatprep.mubr.bf16.mxu0 0
    %124 = vmatmul.mubr.bf16.gmra.mrb[0].mxu0 %v89
    %v125 = vpop.f32.mrb[0].mxu0
    %v126 = vadd.f32 %v70, %v125
    %v127 = vpop.f32.mrb[0].mxu0
    %v128 = vadd.f32 %v74, %v127
    %v129 = vpop.f32.mrb[0].mxu0
    %v130 = vadd.f32 %v70, %v129
    %v131 = vpop.f32.mrb[0].mxu0
    %v132 = vadd.f32 %v74, %v131
    %133 = vdwg.mxu0
    %134 = vst [vmem:[#allocation2] sm:$0xff] %v126
    %135 = vst [vmem:[#allocation2 + $0x8] sm:$0xff] %v128
    %136 = vst [vmem:[#allocation2 + $0x10] sm:$0xff] %v130
    %137 = vst [vmem:[#allocation2 + $0x18] sm:$0xff] %v132
    %vm138 = vcmask 257024
    %139 = vst.msk [vmem:[#allocation3] sm:$0xf] %vm138, 0.0
    %140 = vst.msk [vmem:[#allocation4] sm:$0xf] %vm138, 0.0
    %v141 = vld [vmem:[#allocation10] sm:$0xff]
    %v142 = vld [vmem:[#allocation10 + $0x8] sm:$0xff]
    %v143 = vld [vmem:[#allocation10 + $0x10] sm:$0xff]
    %v144 = vld [vmem:[#allocation10 + $0x18] sm:$0xff]
    %v145 = vld [vmem:[#allocation10 + $0x20] sm:$0xff]
    %v146 = vld [vmem:[#allocation10 + $0x28] sm:$0xff]
    %v147 = vld [vmem:[#allocation10 + $0x30] sm:$0xff]
    %v148 = vld [vmem:[#allocation10 + $0x38] sm:$0xff]
    %v149 = vld [vmem:[#allocation3] sm:$0xf]
    %vm150 = vcmask 261120
    %v152 = vsel %vm150, %v149, 0
    %154 = vmatprep.subr.mxu0 %v142
    %155 = vmatpush1.msra.mxu0 %v141
    %156 = vmatprep.subr.mxu0 %v144
    %157 = vmatpush1.msra.mxu0 %v143
    %158 = vmatprep.subr.mxu0 %v146
    %159 = vmatpush1.msra.mxu0 %v145
    %160 = vmatprep.subr.mxu0 %v148
    %161 = vmatpush1.msra.mxu0 %v147
    %162 = vmatprep.subr.mxu0 0.0
    %163 = vmatpush1.msra.mxu0 0.0
    %164 = vmatprep.subr.mxu0 0.0
    %165 = vmatpush1.msra.mxu0 0.0
    %166 = vmatprep.subr.mxu0 0.0
    %167 = vmatpush1.msra.mxu0 0.0
    %168 = vmatprep.subr.mxu0 0.0
    %169 = vmatpush1.msra.mxu0 0.0
    %170 = vmatprep.subr.mxu0 0.0
    %171 = vmatpush1.msra.mxu0 0.0
    %172 = vmatprep.subr.mxu0 0.0
    %173 = vmatpush1.msra.mxu0 0.0
    %174 = vmatprep.subr.mxu0 0.0
    %175 = vmatpush1.msra.mxu0 0.0
    %176 = vmatprep.subr.mxu0 0.0
    %177 = vmatpush1.msra.mxu0 0.0
    %178 = vmatprep.subr.mxu0 0.0
    %179 = vmatpush1.msra.mxu0 0.0
    %180 = vmatprep.subr.mxu0 0.0
    %181 = vmatpush1.msra.mxu0 0.0
    %182 = vmatprep.subr.mxu0 0.0
    %183 = vmatpush1.msra.mxu0 0.0
    %184 = vmatprep.subr.mxu0 0.0
    %185 = vmatpush1.msra.mxu0 0.0
    %186 = vmatprep.subr.mxu0 0.0
    %187 = vmatpush1.msra.mxu0 0.0
    %188 = vmatprep.subr.mxu0 0.0
    %189 = vmatpush1.msra.mxu0 0.0
    %190 = vmatprep.subr.mxu0 0.0
    %191 = vmatpush1.msra.mxu0 0.0
    %192 = vmatprep.subr.mxu0 0.0
    %193 = vmatpush1.msra.mxu0 0.0
    %194 = vmatprep.subr.mxu0 0.0
    %195 = vmatpush1.msra.mxu0 0.0
    %196 = vmatprep.subr.mxu0 0.0
    %197 = vmatpush1.msra.mxu0 0.0
    %198 = vmatprep.subr.mxu0 0.0
    %199 = vmatpush1.msra.mxu0 0.0
    %200 = vmatprep.subr.mxu0 0.0
    %201 = vmatpush1.msra.mxu0 0.0
    %202 = vmatprep.subr.mxu0 0.0
    %203 = vmatpush1.msra.mxu0 0.0
    %204 = vmatprep.subr.mxu0 0.0
    %205 = vmatpush1.msra.mxu0 0.0
    %206 = vmatprep.subr.mxu0 0.0
    %207 = vmatpush1.msra.mxu0 0.0
    %208 = vmatprep.subr.mxu0 0.0
    %209 = vmatpush1.msra.mxu0 0.0
    %210 = vmatprep.subr.mxu0 0.0
    %211 = vmatpush1.msra.mxu0 0.0
    %212 = vmatprep.subr.mxu0 0.0
    %213 = vmatpush1.msra.mxu0 0.0
    %214 = vmatprep.subr.mxu0 0.0
    %215 = vmatpush1.msra.mxu0 0.0
    %216 = vmatprep.subr.mxu0 0.0
    %217 = vmatpush1.msra.mxu0 0.0
    %218 = vmatprep.mubr.f32.mxu0 0.0
    %219 = vmatmul.mubr.f32.gmra.mrb[0].mxu0 %v152
    %v220 = vpop.f32.mrb[0].mxu0
    %v221 = vadd.f32 0.0, %v220
    %v222 = vpop.f32.mrb[0].mxu0
    %v223 = vadd.f32 0.0, %v222
    %224 = vdwg.mxu0
    %v225 = vld [vmem:[#allocation2] sm:$0x3]
    %v226 = vld [vmem:[#allocation2 + $0x18] sm:$0xc0]
    %v227 = vadd.f32 %v221, %v225
    %v229 = vrot.slane %v226, 4
    %v231 = vadd.f32 %v223, %v229
    %vm232 = vcmask 1041408
    %v233 = vsel %vm232, %v227, %v231
    %v234 = vxor.u32 %v233, 2147483648
    %v235 = vmul.f32 %v234, 1.442695
    %v236 = vpow.pop %v235
    %v237 = vadd.f32 %v236, 1.0
    %v238 = vrcp.pop %v237
    %v239 = vmul.f32 1.0, %v238
    %v240 = vtanh.pop %v233
    %v241 = vld [vmem:[#allocation4] sm:$0xf]
    %243 = vrot.lane.b32.xlu0 %v241, 32
    %v244 = vpop.permute.xlu0 %243
    %v246 = vmul.f32 %v239, %v244
    %248 = vrot.lane.b32.xlu0 %v240, 64
    %v249 = vpop.permute.xlu0 %248
    %v251 = vmul.f32 %v239, %v249
    %253 = vrot.lane.b32.xlu0 %v251, 32
    %v254 = vpop.permute.xlu0 %253
    %v256 = vadd.f32 %v246, %v254
    %v257 = vtanh.pop %v256
    %259 = vrot.lane.b32.xlu0 %v257, 64
    %v260 = vpop.permute.xlu0 %259
    %v262 = vmul.f32 %v239, %v260
    %264 = vrot.lane.b32.xlu0 %v256, 96
    %v265 = vpop.permute.xlu0 %264
    %267 = vst.msk [vmem:[#allocation4] sm:$0xf] %vm138, %v265
    %269 = vrot.lane.b32.xlu0 %v262, 32
    %v270 = vpop.permute.xlu0 %269
    %272 = vst.msk [vmem:[#allocation3] sm:$0xf] %vm138, %v270
    %vm273 = vcmask 254976
    %274 = vst.msk [vmem:[#allocation11] sm:$0x3] %vm273, %v270
    %275 = vrot.lane.b32.xlu0 %v262, 64
    %v276 = vpop.permute.xlu0 %275
    %vm278 = vcmask 519426
    %279 = vst.msk [vmem:[#allocation11 + $0xc] sm:$0xc] %vm278, %v276
    %v280 = vld [vmem:[#allocation3] sm:$0xf]
    %v282 = vsel %vm150, %v280, 0
    %284 = vmatprep.subr.mxu0 %v142
    %285 = vmatpush1.msra.mxu0 %v141
    %286 = vmatprep.subr.mxu0 %v144
    %287 = vmatpush1.msra.mxu0 %v143
    %288 = vmatprep.subr.mxu0 %v146
    %289 = vmatpush1.msra.mxu0 %v145
    %290 = vmatprep.subr.mxu0 %v148
    %291 = vmatpush1.msra.mxu0 %v147
    %292 = vmatprep.subr.mxu0 0.0
    %293 = vmatpush1.msra.mxu0 0.0
    %294 = vmatprep.subr.mxu0 0.0
    %295 = vmatpush1.msra.mxu0 0.0
    %296 = vmatprep.subr.mxu0 0.0
    %297 = vmatpush1.msra.mxu0 0.0
    %298 = vmatprep.subr.mxu0 0.0
    %299 = vmatpush1.msra.mxu0 0.0
    %300 = vmatprep.subr.mxu0 0.0
    %301 = vmatpush1.msra.mxu0 0.0
    %302 = vmatprep.subr.mxu0 0.0
    %303 = vmatpush1.msra.mxu0 0.0
    %304 = vmatprep.subr.mxu0 0.0
    %305 = vmatpush1.msra.mxu0 0.0
    %306 = vmatprep.subr.mxu0 0.0
    %307 = vmatpush1.msra.mxu0 0.0
    %308 = vmatprep.subr.mxu0 0.0
    %309 = vmatpush1.msra.mxu0 0.0
    %310 = vmatprep.subr.mxu0 0.0
    %311 = vmatpush1.msra.mxu0 0.0
    %312 = vmatprep.subr.mxu0 0.0
    %313 = vmatpush1.msra.mxu0 0.0
    %314 = vmatprep.subr.mxu0 0.0
    %315 = vmatpush1.msra.mxu0 0.0
    %316 = vmatprep.subr.mxu0 0.0
    %317 = vmatpush1.msra.mxu0 0.0
    %318 = vmatprep.subr.mxu0 0.0
    %319 = vmatpush1.msra.mxu0 0.0
    %320 = vmatprep.subr.mxu0 0.0
    %321 = vmatpush1.msra.mxu0 0.0
    %322 = vmatprep.subr.mxu0 0.0
    %323 = vmatpush1.msra.mxu0 0.0
    %324 = vmatprep.subr.mxu0 0.0
    %325 = vmatpush1.msra.mxu0 0.0
    %326 = vmatprep.subr.mxu0 0.0
    %327 = vmatpush1.msra.mxu0 0.0
    %328 = vmatprep.subr.mxu0 0.0
    %329 = vmatpush1.msra.mxu0 0.0
    %330 = vmatprep.subr.mxu0 0.0
    %331 = vmatpush1.msra.mxu0 0.0
    %332 = vmatprep.subr.mxu0 0.0
    %333 = vmatpush1.msra.mxu0 0.0
    %334 = vmatprep.subr.mxu0 0.0
    %335 = vmatpush1.msra.mxu0 0.0
    %336 = vmatprep.subr.mxu0 0.0
    %337 = vmatpush1.msra.mxu0 0.0
    %338 = vmatprep.subr.mxu0 0.0
    %339 = vmatpush1.msra.mxu0 0.0
    %340 = vmatprep.subr.mxu0 0.0
    %341 = vmatpush1.msra.mxu0 0.0
    %342 = vmatprep.subr.mxu0 0.0
    %343 = vmatpush1.msra.mxu0 0.0
    %344 = vmatprep.subr.mxu0 0.0
    %345 = vmatpush1.msra.mxu0 0.0
    %346 = vmatprep.subr.mxu0 0.0
    %347 = vmatpush1.msra.mxu0 0.0
    %348 = vmatprep.mubr.f32.mxu0 0.0
    %349 = vmatmul.mubr.f32.gmra.mrb[0].mxu0 %v282
    %v350 = vpop.f32.mrb[0].mxu0
    %v351 = vadd.f32 0.0, %v350
    %v352 = vpop.f32.mrb[0].mxu0
    %v353 = vadd.f32 0.0, %v352
    %354 = vdwg.mxu0
    %v355 = vld [vmem:[#allocation2] sm:$0xc]
    %v356 = vld [vmem:[#allocation2 + $0x18] sm:$0x30]
    %v358 = vrot.slane %v355, 2
    %v360 = vadd.f32 %v351, %v358
    %v362 = vrot.slane %v356, 2
    %v364 = vadd.f32 %v353, %v362
    %v365 = vsel %vm232, %v360, %v364
    %v366 = vxor.u32 %v365, 2147483648
    %v367 = vmul.f32 %v366, 1.442695
    %v368 = vpow.pop %v367
    %v369 = vadd.f32 %v368, 1.0
    %v370 = vrcp.pop %v369
    %v371 = vmul.f32 1.0, %v370
    %v372 = vtanh.pop %v365
    %v373 = vld [vmem:[#allocation4] sm:$0xf]
    %375 = vrot.lane.b32.xlu0 %v373, 32
    %v376 = vpop.permute.xlu0 %375
    %v378 = vmul.f32 %v371, %v376
    %380 = vrot.lane.b32.xlu0 %v372, 64
    %v381 = vpop.permute.xlu0 %380
    %v383 = vmul.f32 %v371, %v381
    %385 = vrot.lane.b32.xlu0 %v383, 32
    %v386 = vpop.permute.xlu0 %385
    %v388 = vadd.f32 %v378, %v386
    %v389 = vtanh.pop %v388
    %391 = vrot.lane.b32.xlu0 %v389, 64
    %v392 = vpop.permute.xlu0 %391
    %v394 = vmul.f32 %v371, %v392
    %396 = vrot.lane.b32.xlu0 %v388, 96
    %v397 = vpop.permute.xlu0 %396
    %399 = vst.msk [vmem:[#allocation4] sm:$0xf] %vm138, %v397
    %401 = vrot.lane.b32.xlu0 %v394, 32
    %v402 = vpop.permute.xlu0 %401
    %404 = vst.msk [vmem:[#allocation3] sm:$0xf] %vm138, %v402
    %405 = vst.msk [vmem:[#allocation11 + $0x2] sm:$0x3] %vm273, %v402
    %406 = vrot.lane.b32.xlu0 %v394, 64
    %v407 = vpop.permute.xlu0 %406
    %409 = vst.msk [vmem:[#allocation11 + $0xa] sm:$0xc] %vm278, %v407
    %v410 = vld [vmem:[#allocation3] sm:$0xf]
    %v412 = vsel %vm150, %v410, 0
    %414 = vmatprep.subr.mxu0 %v142
    %415 = vmatpush1.msra.mxu0 %v141
    %416 = vmatprep.subr.mxu0 %v144
    %417 = vmatpush1.msra.mxu0 %v143
    %418 = vmatprep.subr.mxu0 %v146
    %419 = vmatpush1.msra.mxu0 %v145
    %420 = vmatprep.subr.mxu0 %v148
    %421 = vmatpush1.msra.mxu0 %v147
    %422 = vmatprep.subr.mxu0 0.0
    %423 = vmatpush1.msra.mxu0 0.0
    %424 = vmatprep.subr.mxu0 0.0
    %425 = vmatpush1.msra.mxu0 0.0
    %426 = vmatprep.subr.mxu0 0.0
    %427 = vmatpush1.msra.mxu0 0.0
    %428 = vmatprep.subr.mxu0 0.0
    %429 = vmatpush1.msra.mxu0 0.0
    %430 = vmatprep.subr.mxu0 0.0
    %431 = vmatpush1.msra.mxu0 0.0
    %432 = vmatprep.subr.mxu0 0.0
    %433 = vmatpush1.msra.mxu0 0.0
    %434 = vmatprep.subr.mxu0 0.0
    %435 = vmatpush1.msra.mxu0 0.0
    %436 = vmatprep.subr.mxu0 0.0
    %437 = vmatpush1.msra.mxu0 0.0
    %438 = vmatprep.subr.mxu0 0.0
    %439 = vmatpush1.msra.mxu0 0.0
    %440 = vmatprep.subr.mxu0 0.0
    %441 = vmatpush1.msra.mxu0 0.0
    %442 = vmatprep.subr.mxu0 0.0
    %443 = vmatpush1.msra.mxu0 0.0
    %444 = vmatprep.subr.mxu0 0.0
    %445 = vmatpush1.msra.mxu0 0.0
    %446 = vmatprep.subr.mxu0 0.0
    %447 = vmatpush1.msra.mxu0 0.0
    %448 = vmatprep.subr.mxu0 0.0
    %449 = vmatpush1.msra.mxu0 0.0
    %450 = vmatprep.subr.mxu0 0.0
    %451 = vmatpush1.msra.mxu0 0.0
    %452 = vmatprep.subr.mxu0 0.0
    %453 = vmatpush1.msra.mxu0 0.0
    %454 = vmatprep.subr.mxu0 0.0
    %455 = vmatpush1.msra.mxu0 0.0
    %456 = vmatprep.subr.mxu0 0.0
    %457 = vmatpush1.msra.mxu0 0.0
    %458 = vmatprep.subr.mxu0 0.0
    %459 = vmatpush1.msra.mxu0 0.0
    %460 = vmatprep.subr.mxu0 0.0
    %461 = vmatpush1.msra.mxu0 0.0
    %462 = vmatprep.subr.mxu0 0.0
    %463 = vmatpush1.msra.mxu0 0.0
    %464 = vmatprep.subr.mxu0 0.0
    %465 = vmatpush1.msra.mxu0 0.0
    %466 = vmatprep.subr.mxu0 0.0
    %467 = vmatpush1.msra.mxu0 0.0
    %468 = vmatprep.subr.mxu0 0.0
    %469 = vmatpush1.msra.mxu0 0.0
    %470 = vmatprep.subr.mxu0 0.0
    %471 = vmatpush1.msra.mxu0 0.0
    %472 = vmatprep.subr.mxu0 0.0
    %473 = vmatpush1.msra.mxu0 0.0
    %474 = vmatprep.subr.mxu0 0.0
    %475 = vmatpush1.msra.mxu0 0.0
    %476 = vmatprep.subr.mxu0 0.0
    %477 = vmatpush1.msra.mxu0 0.0
    %478 = vmatprep.mubr.f32.mxu0 0.0
    %479 = vmatmul.mubr.f32.gmra.mrb[0].mxu0 %v412
    %v480 = vpop.f32.mrb[0].mxu0
    %v481 = vadd.f32 0.0, %v480
    %v482 = vpop.f32.mrb[0].mxu0
    %v483 = vadd.f32 0.0, %v482
    %484 = vdwg.mxu0
    %v485 = vld [vmem:[#allocation2] sm:$0x30]
    %v486 = vld [vmem:[#allocation2 + $0x18] sm:$0xc]
    %v488 = vrot.slane %v485, 4
    %v490 = vadd.f32 %v481, %v488
    %v491 = vadd.f32 %v483, %v486
    %v492 = vsel %vm232, %v490, %v491
    %v493 = vxor.u32 %v492, 2147483648
    %v494 = vmul.f32 %v493, 1.442695
    %v495 = vpow.pop %v494
    %v496 = vadd.f32 %v495, 1.0
    %v497 = vrcp.pop %v496
    %v498 = vmul.f32 1.0, %v497
    %v499 = vtanh.pop %v492
    %v500 = vld [vmem:[#allocation4] sm:$0xf]
    %502 = vrot.lane.b32.xlu0 %v500, 32
    %v503 = vpop.permute.xlu0 %502
    %v505 = vmul.f32 %v498, %v503
    %507 = vrot.lane.b32.xlu0 %v499, 64
    %v508 = vpop.permute.xlu0 %507
    %v510 = vmul.f32 %v498, %v508
    %512 = vrot.lane.b32.xlu0 %v510, 32
    %v513 = vpop.permute.xlu0 %512
    %v515 = vadd.f32 %v505, %v513
    %v516 = vtanh.pop %v515
    %518 = vrot.lane.b32.xlu0 %v516, 64
    %v519 = vpop.permute.xlu0 %518
    %v521 = vmul.f32 %v498, %v519
    %523 = vrot.lane.b32.xlu0 %v515, 96
    %v524 = vpop.permute.xlu0 %523
    %526 = vst.msk [vmem:[#allocation4] sm:$0xf] %vm138, %v524
    %528 = vrot.lane.b32.xlu0 %v521, 32
    %v529 = vpop.permute.xlu0 %528
    %531 = vst.msk [vmem:[#allocation3] sm:$0xf] %vm138, %v529
    %532 = vst.msk [vmem:[#allocation11 + $0x4] sm:$0x3] %vm273, %v529
    %533 = vrot.lane.b32.xlu0 %v521, 64
    %v534 = vpop.permute.xlu0 %533
    %536 = vst.msk [vmem:[#allocation11 + $0x8] sm:$0xc] %vm278, %v534
    %v537 = vld [vmem:[#allocation3] sm:$0xf]
    %v539 = vsel %vm150, %v537, 0
    %541 = vmatprep.subr.mxu0 %v142
    %542 = vmatpush1.msra.mxu0 %v141
    %543 = vmatprep.subr.mxu0 %v144
    %544 = vmatpush1.msra.mxu0 %v143
    %545 = vmatprep.subr.mxu0 %v146
    %546 = vmatpush1.msra.mxu0 %v145
    %547 = vmatprep.subr.mxu0 %v148
    %548 = vmatpush1.msra.mxu0 %v147
    %549 = vmatprep.subr.mxu0 0.0
    %550 = vmatpush1.msra.mxu0 0.0
    %551 = vmatprep.subr.mxu0 0.0
    %552 = vmatpush1.msra.mxu0 0.0
    %553 = vmatprep.subr.mxu0 0.0
    %554 = vmatpush1.msra.mxu0 0.0
    %555 = vmatprep.subr.mxu0 0.0
    %556 = vmatpush1.msra.mxu0 0.0
    %557 = vmatprep.subr.mxu0 0.0
    %558 = vmatpush1.msra.mxu0 0.0
    %559 = vmatprep.subr.mxu0 0.0
    %560 = vmatpush1.msra.mxu0 0.0
    %561 = vmatprep.subr.mxu0 0.0
    %562 = vmatpush1.msra.mxu0 0.0
    %563 = vmatprep.subr.mxu0 0.0
    %564 = vmatpush1.msra.mxu0 0.0
    %565 = vmatprep.subr.mxu0 0.0
    %566 = vmatpush1.msra.mxu0 0.0
    %567 = vmatprep.subr.mxu0 0.0
    %568 = vmatpush1.msra.mxu0 0.0
    %569 = vmatprep.subr.mxu0 0.0
    %570 = vmatpush1.msra.mxu0 0.0
    %571 = vmatprep.subr.mxu0 0.0
    %572 = vmatpush1.msra.mxu0 0.0
    %573 = vmatprep.subr.mxu0 0.0
    %574 = vmatpush1.msra.mxu0 0.0
    %575 = vmatprep.subr.mxu0 0.0
    %576 = vmatpush1.msra.mxu0 0.0
    %577 = vmatprep.subr.mxu0 0.0
    %578 = vmatpush1.msra.mxu0 0.0
    %579 = vmatprep.subr.mxu0 0.0
    %580 = vmatpush1.msra.mxu0 0.0
    %581 = vmatprep.subr.mxu0 0.0
    %582 = vmatpush1.msra.mxu0 0.0
    %583 = vmatprep.subr.mxu0 0.0
    %584 = vmatpush1.msra.mxu0 0.0
    %585 = vmatprep.subr.mxu0 0.0
    %586 = vmatpush1.msra.mxu0 0.0
    %587 = vmatprep.subr.mxu0 0.0
    %588 = vmatpush1.msra.mxu0 0.0
    %589 = vmatprep.subr.mxu0 0.0
    %590 = vmatpush1.msra.mxu0 0.0
    %591 = vmatprep.subr.mxu0 0.0
    %592 = vmatpush1.msra.mxu0 0.0
    %593 = vmatprep.subr.mxu0 0.0
    %594 = vmatpush1.msra.mxu0 0.0
    %595 = vmatprep.subr.mxu0 0.0
    %596 = vmatpush1.msra.mxu0 0.0
    %597 = vmatprep.subr.mxu0 0.0
    %598 = vmatpush1.msra.mxu0 0.0
    %599 = vmatprep.subr.mxu0 0.0
    %600 = vmatpush1.msra.mxu0 0.0
    %601 = vmatprep.subr.mxu0 0.0
    %602 = vmatpush1.msra.mxu0 0.0
    %603 = vmatprep.subr.mxu0 0.0
    %604 = vmatpush1.msra.mxu0 0.0
    %605 = vmatprep.mubr.f32.mxu0 0.0
    %606 = vmatmul.mubr.f32.gmra.mrb[0].mxu0 %v539
    %v607 = vpop.f32.mrb[0].mxu0
    %v608 = vadd.f32 0.0, %v607
    %v609 = vpop.f32.mrb[0].mxu0
    %v610 = vadd.f32 0.0, %v609
    %611 = vdwg.mxu0
    %v612 = vld [vmem:[#allocation2] sm:$0xc0]
    %v613 = vld [vmem:[#allocation2 + $0x18] sm:$0x3]
    %v615 = vrot.slane %v612, 6
    %v617 = vadd.f32 %v608, %v615
    %v619 = vrot.slane %v613, 6
    %v621 = vadd.f32 %v610, %v619
    %v622 = vsel %vm232, %v617, %v621
    %v623 = vxor.u32 %v622, 2147483648
    %v624 = vmul.f32 %v623, 1.442695
    %v625 = vpow.pop %v624
    %v626 = vadd.f32 %v625, 1.0
    %v627 = vrcp.pop %v626
    %v628 = vmul.f32 1.0, %v627
    %v629 = vtanh.pop %v622
    %v630 = vld [vmem:[#allocation4] sm:$0xf]
    %632 = vrot.lane.b32.xlu0 %v630, 32
    %v633 = vpop.permute.xlu0 %632
    %v635 = vmul.f32 %v628, %v633
    %637 = vrot.lane.b32.xlu0 %v629, 64
    %v638 = vpop.permute.xlu0 %637
    %v640 = vmul.f32 %v628, %v638
    %642 = vrot.lane.b32.xlu0 %v640, 32
    %v643 = vpop.permute.xlu0 %642
    %v645 = vadd.f32 %v635, %v643
    %v646 = vtanh.pop %v645
    %648 = vrot.lane.b32.xlu0 %v646, 64
    %v649 = vpop.permute.xlu0 %648
    %v651 = vmul.f32 %v628, %v649
    %653 = vrot.lane.b32.xlu0 %v645, 96
    %v654 = vpop.permute.xlu0 %653
    %656 = vst.msk [vmem:[#allocation4] sm:$0xf] %vm138, %v654
    %658 = vrot.lane.b32.xlu0 %v651, 32
    %v659 = vpop.permute.xlu0 %658
    %661 = vst.msk [vmem:[#allocation3] sm:$0xf] %vm138, %v659
    %662 = vst.msk [vmem:[#allocation11 + $0x6] sm:$0x3] %vm273, %v659
    %663 = vrot.lane.b32.xlu0 %v651, 64
    %v664 = vpop.permute.xlu0 %663
    %666 = vst.msk [vmem:[#allocation11 + $0x6] sm:$0xc] %vm278, %v664
    %v667 = vld [vmem:[#allocation3] sm:$0xf]
    %v669 = vsel %vm150, %v667, 0
    %671 = vmatprep.subr.mxu0 %v142
    %672 = vmatpush1.msra.mxu0 %v141
    %673 = vmatprep.subr.mxu0 %v144
    %674 = vmatpush1.msra.mxu0 %v143
    %675 = vmatprep.subr.mxu0 %v146
    %676 = vmatpush1.msra.mxu0 %v145
    %677 = vmatprep.subr.mxu0 %v148
    %678 = vmatpush1.msra.mxu0 %v147
    %679 = vmatprep.subr.mxu0 0.0
    %680 = vmatpush1.msra.mxu0 0.0
    %681 = vmatprep.subr.mxu0 0.0
    %682 = vmatpush1.msra.mxu0 0.0
    %683 = vmatprep.subr.mxu0 0.0
    %684 = vmatpush1.msra.mxu0 0.0
    %685 = vmatprep.subr.mxu0 0.0
    %686 = vmatpush1.msra.mxu0 0.0
    %687 = vmatprep.subr.mxu0 0.0
    %688 = vmatpush1.msra.mxu0 0.0
    %689 = vmatprep.subr.mxu0 0.0
    %690 = vmatpush1.msra.mxu0 0.0
    %691 = vmatprep.subr.mxu0 0.0
    %692 = vmatpush1.msra.mxu0 0.0
    %693 = vmatprep.subr.mxu0 0.0
    %694 = vmatpush1.msra.mxu0 0.0
    %695 = vmatprep.subr.mxu0 0.0
    %696 = vmatpush1.msra.mxu0 0.0
    %697 = vmatprep.subr.mxu0 0.0
    %698 = vmatpush1.msra.mxu0 0.0
    %699 = vmatprep.subr.mxu0 0.0
    %700 = vmatpush1.msra.mxu0 0.0
    %701 = vmatprep.subr.mxu0 0.0
    %702 = vmatpush1.msra.mxu0 0.0
    %703 = vmatprep.subr.mxu0 0.0
    %704 = vmatpush1.msra.mxu0 0.0
    %705 = vmatprep.subr.mxu0 0.0
    %706 = vmatpush1.msra.mxu0 0.0
    %707 = vmatprep.subr.mxu0 0.0
    %708 = vmatpush1.msra.mxu0 0.0
    %709 = vmatprep.subr.mxu0 0.0
    %710 = vmatpush1.msra.mxu0 0.0
    %711 = vmatprep.subr.mxu0 0.0
    %712 = vmatpush1.msra.mxu0 0.0
    %713 = vmatprep.subr.mxu0 0.0
    %714 = vmatpush1.msra.mxu0 0.0
    %715 = vmatprep.subr.mxu0 0.0
    %716 = vmatpush1.msra.mxu0 0.0
    %717 = vmatprep.subr.mxu0 0.0
    %718 = vmatpush1.msra.mxu0 0.0
    %719 = vmatprep.subr.mxu0 0.0
    %720 = vmatpush1.msra.mxu0 0.0
    %721 = vmatprep.subr.mxu0 0.0
    %722 = vmatpush1.msra.mxu0 0.0
    %723 = vmatprep.subr.mxu0 0.0
    %724 = vmatpush1.msra.mxu0 0.0
    %725 = vmatprep.subr.mxu0 0.0
    %726 = vmatpush1.msra.mxu0 0.0
    %727 = vmatprep.subr.mxu0 0.0
    %728 = vmatpush1.msra.mxu0 0.0
    %729 = vmatprep.subr.mxu0 0.0
    %730 = vmatpush1.msra.mxu0 0.0
    %731 = vmatprep.subr.mxu0 0.0
    %732 = vmatpush1.msra.mxu0 0.0
    %733 = vmatprep.subr.mxu0 0.0
    %734 = vmatpush1.msra.mxu0 0.0
    %735 = vmatprep.mubr.f32.mxu0 0.0
    %736 = vmatmul.mubr.f32.gmra.mrb[0].mxu0 %v669
    %v737 = vpop.f32.mrb[0].mxu0
    %v738 = vadd.f32 0.0, %v737
    %v739 = vpop.f32.mrb[0].mxu0
    %v740 = vadd.f32 0.0, %v739
    %741 = vdwg.mxu0
    %v742 = vld [vmem:[#allocation2 + $0x10] sm:$0x3]
    %v743 = vld [vmem:[#allocation2 + $0x8] sm:$0xc0]
    %v744 = vadd.f32 %v738, %v742
    %v746 = vrot.slane %v743, 4
    %v748 = vadd.f32 %v740, %v746
    %v749 = vsel %vm232, %v744, %v748
    %v750 = vxor.u32 %v749, 2147483648
    %v751 = vmul.f32 %v750, 1.442695
    %v752 = vpow.pop %v751
    %v753 = vadd.f32 %v752, 1.0
    %v754 = vrcp.pop %v753
    %v755 = vmul.f32 1.0, %v754
    %v756 = vtanh.pop %v749
    %v757 = vld [vmem:[#allocation4] sm:$0xf]
    %759 = vrot.lane.b32.xlu0 %v757, 32
    %v760 = vpop.permute.xlu0 %759
    %v762 = vmul.f32 %v755, %v760
    %764 = vrot.lane.b32.xlu0 %v756, 64
    %v765 = vpop.permute.xlu0 %764
    %v767 = vmul.f32 %v755, %v765
    %769 = vrot.lane.b32.xlu0 %v767, 32
    %v770 = vpop.permute.xlu0 %769
    %v772 = vadd.f32 %v762, %v770
    %v773 = vtanh.pop %v772
    %775 = vrot.lane.b32.xlu0 %v773, 64
    %v776 = vpop.permute.xlu0 %775
    %v778 = vmul.f32 %v755, %v776
    %780 = vrot.lane.b32.xlu0 %v772, 96
    %v781 = vpop.permute.xlu0 %780
    %783 = vst.msk [vmem:[#allocation4] sm:$0xf] %vm138, %v781
    %785 = vrot.lane.b32.xlu0 %v778, 32
    %v786 = vpop.permute.xlu0 %785
    %788 = vst.msk [vmem:[#allocation3] sm:$0xf] %vm138, %v786
    %789 = vst.msk [vmem:[#allocation11 + $0x8] sm:$0x3] %vm273, %v786
    %790 = vrot.lane.b32.xlu0 %v778, 64
    %v791 = vpop.permute.xlu0 %790
    %793 = vst.msk [vmem:[#allocation11 + $0x4] sm:$0xc] %vm278, %v791
    %v794 = vld [vmem:[#allocation3] sm:$0xf]
    %v796 = vsel %vm150, %v794, 0
    %798 = vmatprep.subr.mxu0 %v142
    %799 = vmatpush1.msra.mxu0 %v141
    %800 = vmatprep.subr.mxu0 %v144
    %801 = vmatpush1.msra.mxu0 %v143
    %802 = vmatprep.subr.mxu0 %v146
    %803 = vmatpush1.msra.mxu0 %v145
    %804 = vmatprep.subr.mxu0 %v148
    %805 = vmatpush1.msra.mxu0 %v147
    %806 = vmatprep.subr.mxu0 0.0
    %807 = vmatpush1.msra.mxu0 0.0
    %808 = vmatprep.subr.mxu0 0.0
    %809 = vmatpush1.msra.mxu0 0.0
    %810 = vmatprep.subr.mxu0 0.0
    %811 = vmatpush1.msra.mxu0 0.0
    %812 = vmatprep.subr.mxu0 0.0
    %813 = vmatpush1.msra.mxu0 0.0
    %814 = vmatprep.subr.mxu0 0.0
    %815 = vmatpush1.msra.mxu0 0.0
    %816 = vmatprep.subr.mxu0 0.0
    %817 = vmatpush1.msra.mxu0 0.0
    %818 = vmatprep.subr.mxu0 0.0
    %819 = vmatpush1.msra.mxu0 0.0
    %820 = vmatprep.subr.mxu0 0.0
    %821 = vmatpush1.msra.mxu0 0.0
    %822 = vmatprep.subr.mxu0 0.0
    %823 = vmatpush1.msra.mxu0 0.0
    %824 = vmatprep.subr.mxu0 0.0
    %825 = vmatpush1.msra.mxu0 0.0
    %826 = vmatprep.subr.mxu0 0.0
    %827 = vmatpush1.msra.mxu0 0.0
    %828 = vmatprep.subr.mxu0 0.0
    %829 = vmatpush1.msra.mxu0 0.0
    %830 = vmatprep.subr.mxu0 0.0
    %831 = vmatpush1.msra.mxu0 0.0
    %832 = vmatprep.subr.mxu0 0.0
    %833 = vmatpush1.msra.mxu0 0.0
    %834 = vmatprep.subr.mxu0 0.0
    %835 = vmatpush1.msra.mxu0 0.0
    %836 = vmatprep.subr.mxu0 0.0
    %837 = vmatpush1.msra.mxu0 0.0
    %838 = vmatprep.subr.mxu0 0.0
    %839 = vmatpush1.msra.mxu0 0.0
    %840 = vmatprep.subr.mxu0 0.0
    %841 = vmatpush1.msra.mxu0 0.0
    %842 = vmatprep.subr.mxu0 0.0
    %843 = vmatpush1.msra.mxu0 0.0
    %844 = vmatprep.subr.mxu0 0.0
    %845 = vmatpush1.msra.mxu0 0.0
    %846 = vmatprep.subr.mxu0 0.0
    %847 = vmatpush1.msra.mxu0 0.0
    %848 = vmatprep.subr.mxu0 0.0
    %849 = vmatpush1.msra.mxu0 0.0
    %850 = vmatprep.subr.mxu0 0.0
    %851 = vmatpush1.msra.mxu0 0.0
    %852 = vmatprep.subr.mxu0 0.0
    %853 = vmatpush1.msra.mxu0 0.0
    %854 = vmatprep.subr.mxu0 0.0
    %855 = vmatpush1.msra.mxu0 0.0
    %856 = vmatprep.subr.mxu0 0.0
    %857 = vmatpush1.msra.mxu0 0.0
    %858 = vmatprep.subr.mxu0 0.0
    %859 = vmatpush1.msra.mxu0 0.0
    %860 = vmatprep.subr.mxu0 0.0
    %861 = vmatpush1.msra.mxu0 0.0
    %862 = vmatprep.mubr.f32.mxu0 0.0
    %863 = vmatmul.mubr.f32.gmra.mrb[0].mxu0 %v796
    %v864 = vpop.f32.mrb[0].mxu0
    %v865 = vadd.f32 0.0, %v864
    %v866 = vpop.f32.mrb[0].mxu0
    %v867 = vadd.f32 0.0, %v866
    %868 = vdwg.mxu0
    %v869 = vld [vmem:[#allocation2 + $0x10] sm:$0xc]
    %v870 = vld [vmem:[#allocation2 + $0x8] sm:$0x30]
    %v872 = vrot.slane %v869, 2
    %v874 = vadd.f32 %v865, %v872
    %v876 = vrot.slane %v870, 2
    %v878 = vadd.f32 %v867, %v876
    %v879 = vsel %vm232, %v874, %v878
    %v880 = vxor.u32 %v879, 2147483648
    %v881 = vmul.f32 %v880, 1.442695
    %v882 = vpow.pop %v881
    %v883 = vadd.f32 %v882, 1.0
    %v884 = vrcp.pop %v883
    %v885 = vmul.f32 1.0, %v884
    %v886 = vtanh.pop %v879
    %v887 = vld [vmem:[#allocation4] sm:$0xf]
    %889 = vrot.lane.b32.xlu0 %v887, 32
    %v890 = vpop.permute.xlu0 %889
    %v892 = vmul.f32 %v885, %v890
    %894 = vrot.lane.b32.xlu0 %v886, 64
    %v895 = vpop.permute.xlu0 %894
    %v897 = vmul.f32 %v885, %v895
    %899 = vrot.lane.b32.xlu0 %v897, 32
    %v900 = vpop.permute.xlu0 %899
    %v902 = vadd.f32 %v892, %v900
    %v903 = vtanh.pop %v902
    %905 = vrot.lane.b32.xlu0 %v903, 64
    %v906 = vpop.permute.xlu0 %905
    %v908 = vmul.f32 %v885, %v906
    %910 = vrot.lane.b32.xlu0 %v902, 96
    %v911 = vpop.permute.xlu0 %910
    %913 = vst.msk [vmem:[#allocation4] sm:$0xf] %vm138, %v911
    %915 = vrot.lane.b32.xlu0 %v908, 32
    %v916 = vpop.permute.xlu0 %915
    %918 = vst.msk [vmem:[#allocation3] sm:$0xf] %vm138, %v916
    %919 = vst.msk [vmem:[#allocation11 + $0xa] sm:$0x3] %vm273, %v916
    %920 = vrot.lane.b32.xlu0 %v908, 64
    %v921 = vpop.permute.xlu0 %920
    %923 = vst.msk [vmem:[#allocation11 + $0x2] sm:$0xc] %vm278, %v921
    %v924 = vld [vmem:[#allocation3] sm:$0xf]
    %v926 = vsel %vm150, %v924, 0
    %928 = vmatprep.subr.mxu0 %v142
    %929 = vmatpush1.msra.mxu0 %v141
    %930 = vmatprep.subr.mxu0 %v144
    %931 = vmatpush1.msra.mxu0 %v143
    %932 = vmatprep.subr.mxu0 %v146
    %933 = vmatpush1.msra.mxu0 %v145
    %934 = vmatprep.subr.mxu0 %v148
    %935 = vmatpush1.msra.mxu0 %v147
    %936 = vmatprep.subr.mxu0 0.0
    %937 = vmatpush1.msra.mxu0 0.0
    %938 = vmatprep.subr.mxu0 0.0
    %939 = vmatpush1.msra.mxu0 0.0
    %940 = vmatprep.subr.mxu0 0.0
    %941 = vmatpush1.msra.mxu0 0.0
    %942 = vmatprep.subr.mxu0 0.0
    %943 = vmatpush1.msra.mxu0 0.0
    %944 = vmatprep.subr.mxu0 0.0
    %945 = vmatpush1.msra.mxu0 0.0
    %946 = vmatprep.subr.mxu0 0.0
    %947 = vmatpush1.msra.mxu0 0.0
    %948 = vmatprep.subr.mxu0 0.0
    %949 = vmatpush1.msra.mxu0 0.0
    %950 = vmatprep.subr.mxu0 0.0
    %951 = vmatpush1.msra.mxu0 0.0
    %952 = vmatprep.subr.mxu0 0.0
    %953 = vmatpush1.msra.mxu0 0.0
    %954 = vmatprep.subr.mxu0 0.0
    %955 = vmatpush1.msra.mxu0 0.0
    %956 = vmatprep.subr.mxu0 0.0
    %957 = vmatpush1.msra.mxu0 0.0
    %958 = vmatprep.subr.mxu0 0.0
    %959 = vmatpush1.msra.mxu0 0.0
    %960 = vmatprep.subr.mxu0 0.0
    %961 = vmatpush1.msra.mxu0 0.0
    %962 = vmatprep.subr.mxu0 0.0
    %963 = vmatpush1.msra.mxu0 0.0
    %964 = vmatprep.subr.mxu0 0.0
    %965 = vmatpush1.msra.mxu0 0.0
    %966 = vmatprep.subr.mxu0 0.0
    %967 = vmatpush1.msra.mxu0 0.0
    %968 = vmatprep.subr.mxu0 0.0
    %969 = vmatpush1.msra.mxu0 0.0
    %970 = vmatprep.subr.mxu0 0.0
    %971 = vmatpush1.msra.mxu0 0.0
    %972 = vmatprep.subr.mxu0 0.0
    %973 = vmatpush1.msra.mxu0 0.0
    %974 = vmatprep.subr.mxu0 0.0
    %975 = vmatpush1.msra.mxu0 0.0
    %976 = vmatprep.subr.mxu0 0.0
    %977 = vmatpush1.msra.mxu0 0.0
    %978 = vmatprep.subr.mxu0 0.0
    %979 = vmatpush1.msra.mxu0 0.0
    %980 = vmatprep.subr.mxu0 0.0
    %981 = vmatpush1.msra.mxu0 0.0
    %982 = vmatprep.subr.mxu0 0.0
    %983 = vmatpush1.msra.mxu0 0.0
    %984 = vmatprep.subr.mxu0 0.0
    %985 = vmatpush1.msra.mxu0 0.0
    %986 = vmatprep.subr.mxu0 0.0
    %987 = vmatpush1.msra.mxu0 0.0
    %988 = vmatprep.subr.mxu0 0.0
    %989 = vmatpush1.msra.mxu0 0.0
    %990 = vmatprep.subr.mxu0 0.0
    %991 = vmatpush1.msra.mxu0 0.0
    %992 = vmatprep.mubr.f32.mxu0 0.0
    %993 = vmatmul.mubr.f32.gmra.mrb[0].mxu0 %v926
    %v994 = vpop.f32.mrb[0].mxu0
    %v995 = vadd.f32 0.0, %v994
    %v996 = vpop.f32.mrb[0].mxu0
    %v997 = vadd.f32 0.0, %v996
    %998 = vdwg.mxu0
    %v999 = vld [vmem:[#allocation2 + $0x10] sm:$0x30]
    %v1000 = vld [vmem:[#allocation2 + $0x8] sm:$0xc]
    %v1002 = vrot.slane %v999, 4
    %v1004 = vadd.f32 %v995, %v1002
    %v1005 = vadd.f32 %v997, %v1000
    %v1006 = vsel %vm232, %v1004, %v1005
    %v1007 = vxor.u32 %v1006, 2147483648
    %v1008 = vmul.f32 %v1007, 1.442695
    %v1009 = vpow.pop %v1008
    %v1010 = vadd.f32 %v1009, 1.0
    %v1011 = vrcp.pop %v1010
    %v1012 = vmul.f32 1.0, %v1011
    %v1013 = vtanh.pop %v1006
    %v1014 = vld [vmem:[#allocation4] sm:$0xf]
    %1016 = vrot.lane.b32.xlu0 %v1014, 32
    %v1017 = vpop.permute.xlu0 %1016
    %v1019 = vmul.f32 %v1012, %v1017
    %1021 = vrot.lane.b32.xlu0 %v1013, 64
    %v1022 = vpop.permute.xlu0 %1021
    %v1024 = vmul.f32 %v1012, %v1022
    %1026 = vrot.lane.b32.xlu0 %v1024, 32
    %v1027 = vpop.permute.xlu0 %1026
    %v1029 = vadd.f32 %v1019, %v1027
    %v1030 = vtanh.pop %v1029
    %1032 = vrot.lane.b32.xlu0 %v1030, 64
    %v1033 = vpop.permute.xlu0 %1032
    %v1035 = vmul.f32 %v1012, %v1033
    %1037 = vrot.lane.b32.xlu0 %v1029, 96
    %v1038 = vpop.permute.xlu0 %1037
    %1040 = vst.msk [vmem:[#allocation4] sm:$0xf] %vm138, %v1038
    %1042 = vrot.lane.b32.xlu0 %v1035, 32
    %v1043 = vpop.permute.xlu0 %1042
    %1045 = vst.msk [vmem:[#allocation3] sm:$0xf] %vm138, %v1043
    %1046 = vst.msk [vmem:[#allocation11 + $0xc] sm:$0x3] %vm273, %v1043
    %1047 = vrot.lane.b32.xlu0 %v1035, 64
    %v1048 = vpop.permute.xlu0 %1047
    %1050 = vst.msk [vmem:[#allocation11] sm:$0xc] %vm278, %v1048
    %v1051 = vld [vmem:[#allocation3] sm:$0xf]
    %v1053 = vsel %vm150, %v1051, 0
    %1055 = vmatprep.subr.mxu0 %v142
    %1056 = vmatpush1.msra.mxu0 %v141
    %1057 = vmatprep.subr.mxu0 %v144
    %1058 = vmatpush1.msra.mxu0 %v143
    %1059 = vmatprep.subr.mxu0 %v146
    %1060 = vmatpush1.msra.mxu0 %v145
    %1061 = vmatprep.subr.mxu0 %v148
    %1062 = vmatpush1.msra.mxu0 %v147
    %1063 = vmatprep.subr.mxu0 0.0
    %1064 = vmatpush1.msra.mxu0 0.0
    %1065 = vmatprep.subr.mxu0 0.0
    %1066 = vmatpush1.msra.mxu0 0.0
    %1067 = vmatprep.subr.mxu0 0.0
    %1068 = vmatpush1.msra.mxu0 0.0
    %1069 = vmatprep.subr.mxu0 0.0
    %1070 = vmatpush1.msra.mxu0 0.0
    %1071 = vmatprep.subr.mxu0 0.0
    %1072 = vmatpush1.msra.mxu0 0.0
    %1073 = vmatprep.subr.mxu0 0.0
    %1074 = vmatpush1.msra.mxu0 0.0
    %1075 = vmatprep.subr.mxu0 0.0
    %1076 = vmatpush1.msra.mxu0 0.0
    %1077 = vmatprep.subr.mxu0 0.0
    %1078 = vmatpush1.msra.mxu0 0.0
    %1079 = vmatprep.subr.mxu0 0.0
    %1080 = vmatpush1.msra.mxu0 0.0
    %1081 = vmatprep.subr.mxu0 0.0
    %1082 = vmatpush1.msra.mxu0 0.0
    %1083 = vmatprep.subr.mxu0 0.0
    %1084 = vmatpush1.msra.mxu0 0.0
    %1085 = vmatprep.subr.mxu0 0.0
    %1086 = vmatpush1.msra.mxu0 0.0
    %1087 = vmatprep.subr.mxu0 0.0
    %1088 = vmatpush1.msra.mxu0 0.0
    %1089 = vmatprep.subr.mxu0 0.0
    %1090 = vmatpush1.msra.mxu0 0.0
    %1091 = vmatprep.subr.mxu0 0.0
    %1092 = vmatpush1.msra.mxu0 0.0
    %1093 = vmatprep.subr.mxu0 0.0
    %1094 = vmatpush1.msra.mxu0 0.0
    %1095 = vmatprep.subr.mxu0 0.0
    %1096 = vmatpush1.msra.mxu0 0.0
    %1097 = vmatprep.subr.mxu0 0.0
    %1098 = vmatpush1.msra.mxu0 0.0
    %1099 = vmatprep.subr.mxu0 0.0
    %1100 = vmatpush1.msra.mxu0 0.0
    %1101 = vmatprep.subr.mxu0 0.0
    %1102 = vmatpush1.msra.mxu0 0.0
    %1103 = vmatprep.subr.mxu0 0.0
    %1104 = vmatpush1.msra.mxu0 0.0
    %1105 = vmatprep.subr.mxu0 0.0
    %1106 = vmatpush1.msra.mxu0 0.0
    %1107 = vmatprep.subr.mxu0 0.0
    %1108 = vmatpush1.msra.mxu0 0.0
    %1109 = vmatprep.subr.mxu0 0.0
    %1110 = vmatpush1.msra.mxu0 0.0
    %1111 = vmatprep.subr.mxu0 0.0
    %1112 = vmatpush1.msra.mxu0 0.0
    %1113 = vmatprep.subr.mxu0 0.0
    %1114 = vmatpush1.msra.mxu0 0.0
    %1115 = vmatprep.subr.mxu0 0.0
    %1116 = vmatpush1.msra.mxu0 0.0
    %1117 = vmatprep.subr.mxu0 0.0
    %1118 = vmatpush1.msra.mxu0 0.0
    %1119 = vmatprep.mubr.f32.mxu0 0.0
    %1120 = vmatmul.mubr.f32.gmra.mrb[0].mxu0 %v1053
    %v1121 = vpop.f32.mrb[0].mxu0
    %v1122 = vadd.f32 0.0, %v1121
    %v1123 = vpop.f32.mrb[0].mxu0
    %v1124 = vadd.f32 0.0, %v1123
    %1125 = vdwg.mxu0
    %v1126 = vld [vmem:[#allocation2 + $0x10] sm:$0xc0]
    %v1127 = vld [vmem:[#allocation2 + $0x8] sm:$0x3]
    %v1129 = vrot.slane %v1126, 6
    %v1131 = vadd.f32 %v1122, %v1129
    %v1133 = vrot.slane %v1127, 6
    %v1135 = vadd.f32 %v1124, %v1133
    %v1136 = vsel %vm232, %v1131, %v1135
    %v1137 = vxor.u32 %v1136, 2147483648
    %v1138 = vmul.f32 %v1137, 1.442695
    %v1139 = vpow.pop %v1138
    %v1140 = vadd.f32 %v1139, 1.0
    %v1141 = vrcp.pop %v1140
    %v1142 = vmul.f32 1.0, %v1141
    %v1143 = vtanh.pop %v1136
    %v1144 = vld [vmem:[#allocation4] sm:$0xf]
    %1146 = vrot.lane.b32.xlu0 %v1144, 32
    %v1147 = vpop.permute.xlu0 %1146
    %v1149 = vmul.f32 %v1142, %v1147
    %1151 = vrot.lane.b32.xlu0 %v1143, 64
    %v1152 = vpop.permute.xlu0 %1151
    %v1154 = vmul.f32 %v1142, %v1152
    %1156 = vrot.lane.b32.xlu0 %v1154, 32
    %v1157 = vpop.permute.xlu0 %1156
    %v1159 = vadd.f32 %v1149, %v1157
    %v1160 = vtanh.pop %v1159
    %1162 = vrot.lane.b32.xlu0 %v1160, 64
    %v1163 = vpop.permute.xlu0 %1162
    %v1165 = vmul.f32 %v1142, %v1163
    %1167 = vrot.lane.b32.xlu0 %v1159, 96
    %v1168 = vpop.permute.xlu0 %1167
    %1170 = vst.msk [vmem:[#allocation4] sm:$0xf] %vm138, %v1168
    %1172 = vrot.lane.b32.xlu0 %v1165, 32
    %v1173 = vpop.permute.xlu0 %1172
    %1175 = vst.msk [vmem:[#allocation3] sm:$0xf] %vm138, %v1173
    %1176 = vst.msk [vmem:[#allocation11 + $0xe] sm:$0x3] %vm273, %v1173
    %1177 = vrot.lane.b32.xlu0 %v1165, 64
    %v1178 = vpop.permute.xlu0 %1177
    %1180 = vst.msk [vmem:[#allocation11 - $0x2] sm:$0xc] %vm278, %v1178
    // Predicated region
    $region30: #{tpu_custom_call.1} parent=1 // pred_check
      _
    $region31: #{tpu_custom_call.1} parent=1 // pred_check_branch
      %1182 = sbr.rel (0) target = $region33
    $region32: #{tpu_custom_call.1} parent=1 // pred_region
      %s1184 = ssub.s32 256, 256
      %1185 = vsyncadd [#allocation7], %s1184
      %s1186 = sshll.u32 [#allocation11], 4
      %s1187 = int_to_ptr.vmem [resolvable:$true] %s1186
      %1192 = dma.vmem_to_hbm [thread:$0]  %s1187, 256, %s4, [#allocation7], 128, 128, 8
    $region33: #{tpu_custom_call.1} parent=1 // pred_fallthru
      _
    // Predicated region
    $region34: #{tpu_custom_call.1} parent=1 // pred_check
      _
    $region35: #{tpu_custom_call.1} parent=1 // pred_check_branch
      %1194 = sbr.rel (0) target = $region37
    $region36: #{tpu_custom_call.1} parent=1 // pred_region
      %1195 = dma.done [#allocation7], 256
    $region37: #{tpu_custom_call.1} parent=1 // pred_fallthru
      _
    %1196 = vsyncpa [#allocation6], 1
    %1197 = vsyncpa [#allocation9], 1
    %1198 = vsyncpa [#allocation7], 1

</llo_original>
